<compile_context>
chip_gen: v5e
topology: v5e:2x2
jax: 0.10.0
libtpu: 0.0.40
codegen_flags: <defaults>
</compile_context>

<pallas_src>
import math
import functools

import jax
import jax.numpy as jnp
from jax import lax
from jax.experimental import pallas as pl
from jax.experimental.pallas import tpu as pltpu  # noqa: F401  (TPU backend assumed)


# ----------------------------- config ---------------------------------------
CONFIG = dict(
    vocab_size=128,
    context_length=8,
    emb_dim=32,
    n_heads=4,
    n_layers=2,
    drop_rate=0.0,
)
LN_EPS = 1e-5

# Order of per-block parameters as passed (flattened) to the fused kernel.
BLOCK_PARAM_ORDER = (
    "ln1_w", "ln1_b", "w_qkv", "b_qkv", "wo", "bo",
    "ln2_w", "ln2_b", "w1", "b1", "w2", "b2",
)
_P_PER_BLOCK = len(BLOCK_PARAM_ORDER)


# --------------------------- kernel helpers ----------------------------------
def _layernorm(x, w, b):
    # x: (N, C) f32; w/b: (1, C)
    mean = jnp.mean(x, axis=-1, keepdims=True)
    var = jnp.mean((x - mean) ** 2, axis=-1, keepdims=True)
    return (x - mean) * lax.rsqrt(var + LN_EPS) * w + b


def _gelu_tanh(x):
    # GELU(approximate='tanh')
    c = math.sqrt(2.0 / math.pi)
    return 0.5 * x * (1.0 + jnp.tanh(c * (x + 0.044715 * x * x * x)))


# ----------------------- fused GPT forward kernel ----------------------------
def gpt_forward_kernel(idx_ref, tok_emb_ref, pos_emb_ref, *refs,
                       num_heads, n_layers, batch, seq):
    out_ref = refs[-1]
    prm = refs[:-1]

    V, C = tok_emb_ref.shape
    BT = batch * seq
    hs = C // num_heads
    scale = 1.0 / math.sqrt(hs)

    # ---- token embedding gather (one-hot matmul on the MXU) + pos add ----
    ids = idx_ref[...]                                          # (BT, 1) int32
    vocab_iota = lax.broadcasted_iota(jnp.int32, (BT, V), 1)
    onehot = (vocab_iota == ids).astype(jnp.float32)            # (BT, V)
    x = jnp.dot(onehot, tok_emb_ref[...],
                preferred_element_type=jnp.float32)             # (BT, C)
    x = x + jnp.tile(pos_emb_ref[...], (batch, 1))              # dropout == id

    # ---- causal additive mask, built once, reused by both blocks ----
    rows = lax.broadcasted_iota(jnp.int32, (seq, seq), 0)
    cols = lax.broadcasted_iota(jnp.int32, (seq, seq), 1)
    mask_bias = jnp.where(cols > rows, -1e30, 0.0).astype(jnp.float32)
    mask_bias = mask_bias[None, :, :]                           # (1, T, T)

    for layer in range(n_layers):                               # static unroll
        (ln1_w, ln1_b, w_qkv, b_qkv, wo, bo,
         ln2_w, ln2_b, w1, b1, w2, b2) = prm[layer * _P_PER_BLOCK:
                                             (layer + 1) * _P_PER_BLOCK]

        # ---- multi-head causal self-attention over LN1(x) ----
        xn = _layernorm(x, ln1_w[...], ln1_b[...])
        qkv = jnp.dot(xn, w_qkv[...],
                      preferred_element_type=jnp.float32) + b_qkv[...]
        q = qkv[:, 0 * C:1 * C].reshape(batch, seq, C)          # safe reshapes:
        k = qkv[:, 1 * C:2 * C].reshape(batch, seq, C)          # split sublanes,
        v = qkv[:, 2 * C:3 * C].reshape(batch, seq, C)          # lanes untouched

        wo_full = wo[...]
        attn = jnp.zeros((BT, C), jnp.float32)
        for h in range(num_heads):                              # static unroll
            sl = slice(h * hs, (h + 1) * hs)
            qh, kh, vh = q[:, :, sl], k[:, :, sl], v[:, :, sl]  # (B, T, hs)
            s = jnp.einsum('btd,bsd->bts', qh, kh,
                           preferred_element_type=jnp.float32) * scale
            s = s + mask_bias
            s = s - jnp.max(s, axis=-1, keepdims=True)
            p = jnp.exp(s)
            denom = jnp.sum(p, axis=-1, keepdims=True)
            p = p * pl.reciprocal(denom, approx=True)
            yh = jnp.einsum('bts,bsd->btd', p, vh,
                            preferred_element_type=jnp.float32)  # (B, T, hs)
            # Fold the output projection into the head loop (no concatenate):
            attn = attn + jnp.dot(yh.reshape(BT, hs), wo_full[sl, :],
                                  preferred_element_type=jnp.float32)
        x = x + attn + bo[...]                                   # dropout == id

        # ---- feed-forward over LN2(x) ----
        xn2 = _layernorm(x, ln2_w[...], ln2_b[...])
        h1 = jnp.dot(xn2, w1[...],
                     preferred_element_type=jnp.float32) + b1[...]
        h1 = _gelu_tanh(h1)
        h2 = jnp.dot(h1, w2[...],
                     preferred_element_type=jnp.float32) + b2[...]
        x = x + h2                                               # dropout == id

    # ---- final LayerNorm + LM head (lane-dense V=128 output) ----
    lnf_w, lnf_b, w_out = prm[n_layers * _P_PER_BLOCK:]
    xn = _layernorm(x, lnf_w[...], lnf_b[...])
    logits = jnp.dot(xn, w_out[...],
                     preferred_element_type=jnp.float32)         # (BT, V)
    out_ref[...] = logits.reshape(batch, seq, V).astype(out_ref.dtype)


# ------------------------------ wrapper ---------------------------------------
def gpt_forward(idx, params, config):
    B, T = idx.shape
    V = config["vocab_size"]

    flat = [params["tok_emb"], params["pos_emb"][:T]]
    for blk in params["blocks"]:
        flat += [blk[name] for name in BLOCK_PARAM_ORDER]
    flat += [params["lnf_w"], params["lnf_b"], params["w_out"]]

    idx2 = idx.reshape(B * T, 1).astype(jnp.int32)

    kernel = functools.partial(
        gpt_forward_kernel,
        num_heads=config["n_heads"],
        n_layers=config["n_layers"],
        batch=B, seq=T,
    )
    # No grid: whole problem in one step; all inputs/outputs are whole-array
    # VMEM blocks (total < 200 KiB -> fits every generation with huge headroom).
    # TODO(synk): on v7x a 2-way 'parallel' batch grid could engage both
    # TensorCores, but at this size per-step overhead outweighs the win.
    return pl.pallas_call(
        kernel,
        out_shape=jax.ShapeDtypeStruct((B, T, V), jnp.float32),
    )(idx2, *flat)


# --------------------------- parameter init -----------------------------------
def init_params(config, key):
    C = config["emb_dim"]
    V = config["vocab_size"]
    L = config["context_length"]

    def normal(k, shape):
        return 0.02 * jax.random.normal(k, shape, dtype=jnp.float32)

    keys = iter(jax.random.split(key, 8 + 8 * config["n_layers"]))
    params = {
        "tok_emb": normal(next(keys), (V, C)),
        "pos_emb": normal(next(keys), (L, C)),
        # out_head: nn.Linear(C, V, bias=False) weight (V, C); store (C, V)
        "w_out": normal(next(keys), (V, C)).T,
        "lnf_w": jnp.ones((1, C), jnp.float32),
        "lnf_b": jnp.zeros((1, C), jnp.float32),
        "blocks": [],
    }
    for _ in range(config["n_layers"]):
        # nn.Linear weights are (out, in); store transposed (in, out).
        wq = normal(next(keys), (C, C)).T
        wk = normal(next(keys), (C, C)).T
        wv = normal(next(keys), (C, C)).T
        blk = {
            "ln1_w": jnp.ones((1, C), jnp.float32),
            "ln1_b": jnp.zeros((1, C), jnp.float32),
            "w_qkv": jnp.concatenate([wq, wk, wv], axis=1),      # (C, 3C)
            "b_qkv": jnp.zeros((1, 3 * C), jnp.float32),
            "wo": normal(next(keys), (C, C)).T,
            "bo": jnp.zeros((1, C), jnp.float32),
            "ln2_w": jnp.ones((1, C), jnp.float32),
            "ln2_b": jnp.zeros((1, C), jnp.float32),
            "w1": normal(next(keys), (4 * C, C)).T,
            "b1": jnp.zeros((1, 4 * C), jnp.float32),
            "w2": normal(next(keys), (C, 4 * C)).T,
            "b2": jnp.zeros((1, C), jnp.float32),
        }
        params["blocks"].append(blk)
    return params


# --------------------------- pure-JAX reference --------------------------------
def gpt_forward_reference(idx, params, config):
    C = config["emb_dim"]
    H = config["n_heads"]
    hs = C // H
    B, T = idx.shape

    def ln(x, w, b):
        m = jnp.mean(x, -1, keepdims=True)
        v = jnp.mean((x - m) ** 2, -1, keepdims=True)
        return (x - m) / jnp.sqrt(v + LN_EPS) * w + b

    x = jnp.take(params["tok_emb"], idx, axis=0) + params["pos_emb"][:T][None]
    mask = jnp.triu(jnp.ones((T, T), bool), 1)
    for blk in params["blocks"]:
        xn = ln(x, blk["ln1_w"], blk["ln1_b"])
        qkv = xn @ blk["w_qkv"] + blk["b_qkv"]
        q, k, v = jnp.split(qkv, 3, axis=-1)

        def heads(z):
            return z.reshape(B, T, H, hs).transpose(0, 2, 1, 3)

        qh, kh, vh = heads(q), heads(k), heads(v)
        s = (qh @ kh.transpose(0, 1, 3, 2)) / math.sqrt(hs)
        s = jnp.where(mask, -jnp.inf, s)
        p = jax.nn.softmax(s, axis=-1)
        y = (p @ vh).transpose(0, 2, 1, 3).reshape(B, T, C)
        x = x + y @ blk["wo"] + blk["bo"]

        xn2 = ln(x, blk["ln2_w"], blk["ln2_b"])
        h1 = jax.nn.gelu(xn2 @ blk["w1"] + blk["b1"], approximate=True)
        x = x + h1 @ blk["w2"] + blk["b2"]

    x = ln(x, params["lnf_w"], params["lnf_b"])
    return x @ params["w_out"]


# --------------------------------- main ---------------------------------------
if __name__ == "__main__":
    key = jax.random.PRNGKey(0)
    pkey, dkey = jax.random.split(key)

    params = init_params(CONFIG, pkey)

    B, T = 2, CONFIG["context_length"]
    idx = jax.random.randint(dkey, (B, T), 0, CONFIG["vocab_size"], dtype=jnp.int32)

    logits = gpt_forward(idx, params, CONFIG)
    logits = jax.block_until_ready(logits)

    assert logits.shape == (B, T, CONFIG["vocab_size"]), logits.shape
    assert bool(jnp.all(jnp.isfinite(logits)))

    ref = gpt_forward_reference(idx, params, CONFIG)
    assert bool(jnp.allclose(logits, ref, atol=5e-3, rtol=5e-3)), (
        float(jnp.max(jnp.abs(logits - ref)))
    )
    print("KERNEL_OK")
</pallas_src>

<mosaic_0001>
module attributes {stable_mosaic.version = 11 : i64} {
  func.func @gpt_forward_kernel(%arg0: memref<16x1xi32, #tpu.memory_space<vmem>>, %arg1: memref<128x32xf32, #tpu.memory_space<vmem>>, %arg2: memref<8x32xf32, #tpu.memory_space<vmem>>, %arg3: memref<1x32xf32, #tpu.memory_space<vmem>>, %arg4: memref<1x32xf32, #tpu.memory_space<vmem>>, %arg5: memref<32x96xf32, #tpu.memory_space<vmem>>, %arg6: memref<1x96xf32, #tpu.memory_space<vmem>>, %arg7: memref<32x32xf32, #tpu.memory_space<vmem>>, %arg8: memref<1x32xf32, #tpu.memory_space<vmem>>, %arg9: memref<1x32xf32, #tpu.memory_space<vmem>>, %arg10: memref<1x32xf32, #tpu.memory_space<vmem>>, %arg11: memref<32x128xf32, #tpu.memory_space<vmem>>, %arg12: memref<1x128xf32, #tpu.memory_space<vmem>>, %arg13: memref<128x32xf32, #tpu.memory_space<vmem>>, %arg14: memref<1x32xf32, #tpu.memory_space<vmem>>, %arg15: memref<1x32xf32, #tpu.memory_space<vmem>>, %arg16: memref<1x32xf32, #tpu.memory_space<vmem>>, %arg17: memref<32x96xf32, #tpu.memory_space<vmem>>, %arg18: memref<1x96xf32, #tpu.memory_space<vmem>>, %arg19: memref<32x32xf32, #tpu.memory_space<vmem>>, %arg20: memref<1x32xf32, #tpu.memory_space<vmem>>, %arg21: memref<1x32xf32, #tpu.memory_space<vmem>>, %arg22: memref<1x32xf32, #tpu.memory_space<vmem>>, %arg23: memref<32x128xf32, #tpu.memory_space<vmem>>, %arg24: memref<1x128xf32, #tpu.memory_space<vmem>>, %arg25: memref<128x32xf32, #tpu.memory_space<vmem>>, %arg26: memref<1x32xf32, #tpu.memory_space<vmem>>, %arg27: memref<1x32xf32, #tpu.memory_space<vmem>>, %arg28: memref<1x32xf32, #tpu.memory_space<vmem>>, %arg29: memref<32x128xf32, #tpu.memory_space<vmem>>, %arg30: memref<2x8x128xf32, #tpu.memory_space<vmem>>) attributes {dimension_semantics = [], scalar_prefetch = 0 : i64, scratch_operands = 0 : i64, tpu.core_type = #tpu.core_type<tc>} {
    %c0 = arith.constant 0 : index
    %c0_0 = arith.constant 0 : index
    %0 = vector.load %arg0[%c0, %c0_0] : memref<16x1xi32, #tpu.memory_space<vmem>>, vector<16x1xi32>
    %1 = tpu.iota {dimensions = array<i32: 1>} : vector<16x128xi32>
    %2 = vector.broadcast %0 : vector<16x1xi32> to vector<16x128xi32>
    %3 = arith.cmpi eq, %1, %2 : vector<16x128xi32>
    %4 = arith.extui %3 : vector<16x128xi1> to vector<16x128xi32>
    %5 = arith.sitofp %4 : vector<16x128xi32> to vector<16x128xf32>
    %c0_1 = arith.constant 0 : index
    %c0_2 = arith.constant 0 : index
    %6 = vector.load %arg1[%c0_1, %c0_2] : memref<128x32xf32, #tpu.memory_space<vmem>>, vector<128x32xf32>
    %cst = arith.constant dense<0.000000e+00> : vector<16x32xf32>
    %7 = tpu.matmul %5, %6, %cst {dimension_numbers = #tpu.dot_dimension_numbers<[1], [0], [0], [1], [0, 0, 1, 1], [], []>} : vector<16x128xf32>, vector<128x32xf32>, vector<16x32xf32> -> vector<16x32xf32>
    %c0_3 = arith.constant 0 : index
    %c0_4 = arith.constant 0 : index
    %8 = vector.load %arg2[%c0_3, %c0_4] : memref<8x32xf32, #tpu.memory_space<vmem>>, vector<8x32xf32>
    %9 = tpu.concatenate %8, %8 in 0 : vector<8x32xf32>, vector<8x32xf32> -> vector<16x32xf32>
    %10 = arith.addf %7, %9 : vector<16x32xf32>
    %11 = tpu.iota {dimensions = array<i32: 0>} : vector<8x8xi32>
    %12 = tpu.iota {dimensions = array<i32: 1>} : vector<8x8xi32>
    %13 = arith.cmpi sgt, %12, %11 : vector<8x8xi32>
    %cst_5 = arith.constant -1.000000e+30 : f32
    %cst_6 = arith.constant 0.000000e+00 : f32
    %14 = vector.broadcast %cst_5 : f32 to vector<8x8xf32>
    %15 = vector.broadcast %cst_6 : f32 to vector<8x8xf32>
    %16 = arith.select %13, %14, %15 : vector<8x8xi1>, vector<8x8xf32>
    %17 = vector.shape_cast %16 : vector<8x8xf32> to vector<1x8x8xf32>
    %c0_7 = arith.constant 0 : index
    %c0_8 = arith.constant 0 : index
    %18 = vector.load %arg3[%c0_7, %c0_8] : memref<1x32xf32, #tpu.memory_space<vmem>>, vector<1x32xf32>
    %c0_9 = arith.constant 0 : index
    %c0_10 = arith.constant 0 : index
    %19 = vector.load %arg4[%c0_9, %c0_10] : memref<1x32xf32, #tpu.memory_space<vmem>>, vector<1x32xf32>
    %cst_11 = arith.constant dense<0.000000e+00> : vector<16xf32>
    %20 = vector.multi_reduction <add>, %10, %cst_11 [1] : vector<16x32xf32> to vector<16xf32>
    %21 = vector.shape_cast %20 : vector<16xf32> to vector<16x1xf32>
    %cst_12 = arith.constant 3.200000e+01 : f32
    %22 = vector.broadcast %cst_12 : f32 to vector<16x1xf32>
    %23 = arith.divf %21, %22 : vector<16x1xf32>
    %24 = vector.broadcast %23 : vector<16x1xf32> to vector<16x32xf32>
    %25 = arith.subf %10, %24 : vector<16x32xf32>
    %26 = arith.mulf %25, %25 : vector<16x32xf32>
    %cst_13 = arith.constant dense<0.000000e+00> : vector<16xf32>
    %27 = vector.multi_reduction <add>, %26, %cst_13 [1] : vector<16x32xf32> to vector<16xf32>
    %28 = vector.shape_cast %27 : vector<16xf32> to vector<16x1xf32>
    %cst_14 = arith.constant 3.200000e+01 : f32
    %29 = vector.broadcast %cst_14 : f32 to vector<16x1xf32>
    %30 = arith.divf %28, %29 : vector<16x1xf32>
    %31 = vector.broadcast %23 : vector<16x1xf32> to vector<16x32xf32>
    %32 = arith.subf %10, %31 : vector<16x32xf32>
    %cst_15 = arith.constant 9.99999974E-6 : f32
    %33 = vector.broadcast %cst_15 : f32 to vector<16x1xf32>
    %34 = arith.addf %30, %33 : vector<16x1xf32>
    %35 = math.rsqrt %34 : vector<16x1xf32>
    %36 = vector.broadcast %35 : vector<16x1xf32> to vector<16x32xf32>
    %37 = arith.mulf %32, %36 : vector<16x32xf32>
    %38 = vector.broadcast %18 : vector<1x32xf32> to vector<16x32xf32>
    %39 = arith.mulf %37, %38 : vector<16x32xf32>
    %40 = vector.broadcast %19 : vector<1x32xf32> to vector<16x32xf32>
    %41 = arith.addf %39, %40 : vector<16x32xf32>
    %c0_16 = arith.constant 0 : index
    %c0_17 = arith.constant 0 : index
    %42 = vector.load %arg5[%c0_16, %c0_17] : memref<32x96xf32, #tpu.memory_space<vmem>>, vector<32x96xf32>
    %cst_18 = arith.constant dense<0.000000e+00> : vector<16x96xf32>
    %43 = tpu.matmul %41, %42, %cst_18 {dimension_numbers = #tpu.dot_dimension_numbers<[1], [0], [0], [1], [0, 0, 1, 1], [], []>} : vector<16x32xf32>, vector<32x96xf32>, vector<16x96xf32> -> vector<16x96xf32>
    %c0_19 = arith.constant 0 : index
    %c0_20 = arith.constant 0 : index
    %44 = vector.load %arg6[%c0_19, %c0_20] : memref<1x96xf32, #tpu.memory_space<vmem>>, vector<1x96xf32>
    %45 = vector.broadcast %44 : vector<1x96xf32> to vector<16x96xf32>
    %46 = arith.addf %43, %45 : vector<16x96xf32>
    %47 = vector.extract_strided_slice %46 {offsets = [0, 0], sizes = [16, 32], strides = [1, 1]} : vector<16x96xf32> to vector<16x32xf32>
    %48 = vector.shape_cast %47 : vector<16x32xf32> to vector<2x8x32xf32>
    %49 = vector.extract_strided_slice %46 {offsets = [0, 32], sizes = [16, 32], strides = [1, 1]} : vector<16x96xf32> to vector<16x32xf32>
    %50 = vector.shape_cast %49 : vector<16x32xf32> to vector<2x8x32xf32>
    %51 = vector.extract_strided_slice %46 {offsets = [0, 64], sizes = [16, 32], strides = [1, 1]} : vector<16x96xf32> to vector<16x32xf32>
    %52 = vector.shape_cast %51 : vector<16x32xf32> to vector<2x8x32xf32>
    %c0_21 = arith.constant 0 : index
    %c0_22 = arith.constant 0 : index
    %53 = vector.load %arg7[%c0_21, %c0_22] : memref<32x32xf32, #tpu.memory_space<vmem>>, vector<32x32xf32>
    %cst_23 = arith.constant 0.000000e+00 : f32
    %54 = vector.broadcast %cst_23 : f32 to vector<16x32xf32>
    %55 = vector.extract_strided_slice %48 {offsets = [0, 0, 0], sizes = [2, 8, 8], strides = [1, 1, 1]} : vector<2x8x32xf32> to vector<2x8x8xf32>
    %56 = vector.extract_strided_slice %50 {offsets = [0, 0, 0], sizes = [2, 8, 8], strides = [1, 1, 1]} : vector<2x8x32xf32> to vector<2x8x8xf32>
    %57 = vector.extract_strided_slice %52 {offsets = [0, 0, 0], sizes = [2, 8, 8], strides = [1, 1, 1]} : vector<2x8x32xf32> to vector<2x8x8xf32>
    "tpu.trace_start"() <{level = 10 : i32, message = "btd,bsd->bts"}> : () -> ()
    %cst_24 = arith.constant dense<0.000000e+00> : vector<2x8x8xf32>
    %58 = tpu.matmul %55, %56, %cst_24 {dimension_numbers = #tpu.dot_dimension_numbers<[2], [2], [1], [1], [0, 0, 0, 1, 1, 1], [0], [0]>} : vector<2x8x8xf32>, vector<2x8x8xf32>, vector<2x8x8xf32> -> vector<2x8x8xf32>
    "tpu.trace_stop"() : () -> ()
    %cst_25 = arith.constant 0.353553385 : f32
    %59 = vector.broadcast %cst_25 : f32 to vector<2x8x8xf32>
    %60 = arith.mulf %58, %59 : vector<2x8x8xf32>
    %61 = vector.broadcast %17 : vector<1x8x8xf32> to vector<2x8x8xf32>
    %62 = arith.addf %60, %61 : vector<2x8x8xf32>
    %cst_26 = arith.constant dense<0xFF800000> : vector<2x8xf32>
    %63 = vector.multi_reduction <maximumf>, %62, %cst_26 [2] : vector<2x8x8xf32> to vector<2x8xf32>
    %64 = vector.shape_cast %63 : vector<2x8xf32> to vector<2x8x1xf32>
    %65 = vector.broadcast %64 : vector<2x8x1xf32> to vector<2x8x8xf32>
    %66 = arith.subf %62, %65 : vector<2x8x8xf32>
    %67 = math.exp %66 : vector<2x8x8xf32>
    %cst_27 = arith.constant dense<0.000000e+00> : vector<2x8xf32>
    %68 = vector.multi_reduction <add>, %67, %cst_27 [2] : vector<2x8x8xf32> to vector<2x8xf32>
    %69 = vector.shape_cast %68 : vector<2x8xf32> to vector<2x8x1xf32>
    %70 = tpu.reciprocal %69 {approx = true} : vector<2x8x1xf32> -> vector<2x8x1xf32>
    %71 = vector.broadcast %70 : vector<2x8x1xf32> to vector<2x8x8xf32>
    %72 = arith.mulf %67, %71 : vector<2x8x8xf32>
    "tpu.trace_start"() <{level = 10 : i32, message = "bts,bsd->btd"}> : () -> ()
    %cst_28 = arith.constant dense<0.000000e+00> : vector<2x8x8xf32>
    %73 = tpu.matmul %72, %57, %cst_28 {dimension_numbers = #tpu.dot_dimension_numbers<[2], [1], [1], [2], [0, 0, 0, 1, 1, 2], [0], [0]>} : vector<2x8x8xf32>, vector<2x8x8xf32>, vector<2x8x8xf32> -> vector<2x8x8xf32>
    "tpu.trace_stop"() : () -> ()
    %74 = vector.shape_cast %73 : vector<2x8x8xf32> to vector<16x8xf32>
    %75 = vector.extract_strided_slice %53 {offsets = [0, 0], sizes = [8, 32], strides = [1, 1]} : vector<32x32xf32> to vector<8x32xf32>
    %cst_29 = arith.constant dense<0.000000e+00> : vector<16x32xf32>
    %76 = tpu.matmul %74, %75, %cst_29 {dimension_numbers = #tpu.dot_dimension_numbers<[1], [0], [0], [1], [0, 0, 1, 1], [], []>} : vector<16x8xf32>, vector<8x32xf32>, vector<16x32xf32> -> vector<16x32xf32>
    %77 = arith.addf %54, %76 : vector<16x32xf32>
    %78 = vector.extract_strided_slice %48 {offsets = [0, 0, 8], sizes = [2, 8, 8], strides = [1, 1, 1]} : vector<2x8x32xf32> to vector<2x8x8xf32>
    %79 = vector.extract_strided_slice %50 {offsets = [0, 0, 8], sizes = [2, 8, 8], strides = [1, 1, 1]} : vector<2x8x32xf32> to vector<2x8x8xf32>
    %80 = vector.extract_strided_slice %52 {offsets = [0, 0, 8], sizes = [2, 8, 8], strides = [1, 1, 1]} : vector<2x8x32xf32> to vector<2x8x8xf32>
    "tpu.trace_start"() <{level = 10 : i32, message = "btd,bsd->bts"}> : () -> ()
    %cst_30 = arith.constant dense<0.000000e+00> : vector<2x8x8xf32>
    %81 = tpu.matmul %78, %79, %cst_30 {dimension_numbers = #tpu.dot_dimension_numbers<[2], [2], [1], [1], [0, 0, 0, 1, 1, 1], [0], [0]>} : vector<2x8x8xf32>, vector<2x8x8xf32>, vector<2x8x8xf32> -> vector<2x8x8xf32>
    "tpu.trace_stop"() : () -> ()
    %cst_31 = arith.constant 0.353553385 : f32
    %82 = vector.broadcast %cst_31 : f32 to vector<2x8x8xf32>
    %83 = arith.mulf %81, %82 : vector<2x8x8xf32>
    %84 = vector.broadcast %17 : vector<1x8x8xf32> to vector<2x8x8xf32>
    %85 = arith.addf %83, %84 : vector<2x8x8xf32>
    %cst_32 = arith.constant dense<0xFF800000> : vector<2x8xf32>
    %86 = vector.multi_reduction <maximumf>, %85, %cst_32 [2] : vector<2x8x8xf32> to vector<2x8xf32>
    %87 = vector.shape_cast %86 : vector<2x8xf32> to vector<2x8x1xf32>
    %88 = vector.broadcast %87 : vector<2x8x1xf32> to vector<2x8x8xf32>
    %89 = arith.subf %85, %88 : vector<2x8x8xf32>
    %90 = math.exp %89 : vector<2x8x8xf32>
    %cst_33 = arith.constant dense<0.000000e+00> : vector<2x8xf32>
    %91 = vector.multi_reduction <add>, %90, %cst_33 [2] : vector<2x8x8xf32> to vector<2x8xf32>
    %92 = vector.shape_cast %91 : vector<2x8xf32> to vector<2x8x1xf32>
    %93 = tpu.reciprocal %92 {approx = true} : vector<2x8x1xf32> -> vector<2x8x1xf32>
    %94 = vector.broadcast %93 : vector<2x8x1xf32> to vector<2x8x8xf32>
    %95 = arith.mulf %90, %94 : vector<2x8x8xf32>
    "tpu.trace_start"() <{level = 10 : i32, message = "bts,bsd->btd"}> : () -> ()
    %cst_34 = arith.constant dense<0.000000e+00> : vector<2x8x8xf32>
    %96 = tpu.matmul %95, %80, %cst_34 {dimension_numbers = #tpu.dot_dimension_numbers<[2], [1], [1], [2], [0, 0, 0, 1, 1, 2], [0], [0]>} : vector<2x8x8xf32>, vector<2x8x8xf32>, vector<2x8x8xf32> -> vector<2x8x8xf32>
    "tpu.trace_stop"() : () -> ()
    %97 = vector.shape_cast %96 : vector<2x8x8xf32> to vector<16x8xf32>
    %98 = vector.extract_strided_slice %53 {offsets = [8, 0], sizes = [8, 32], strides = [1, 1]} : vector<32x32xf32> to vector<8x32xf32>
    %cst_35 = arith.constant dense<0.000000e+00> : vector<16x32xf32>
    %99 = tpu.matmul %97, %98, %cst_35 {dimension_numbers = #tpu.dot_dimension_numbers<[1], [0], [0], [1], [0, 0, 1, 1], [], []>} : vector<16x8xf32>, vector<8x32xf32>, vector<16x32xf32> -> vector<16x32xf32>
    %100 = arith.addf %77, %99 : vector<16x32xf32>
    %101 = vector.extract_strided_slice %48 {offsets = [0, 0, 16], sizes = [2, 8, 8], strides = [1, 1, 1]} : vector<2x8x32xf32> to vector<2x8x8xf32>
    %102 = vector.extract_strided_slice %50 {offsets = [0, 0, 16], sizes = [2, 8, 8], strides = [1, 1, 1]} : vector<2x8x32xf32> to vector<2x8x8xf32>
    %103 = vector.extract_strided_slice %52 {offsets = [0, 0, 16], sizes = [2, 8, 8], strides = [1, 1, 1]} : vector<2x8x32xf32> to vector<2x8x8xf32>
    "tpu.trace_start"() <{level = 10 : i32, message = "btd,bsd->bts"}> : () -> ()
    %cst_36 = arith.constant dense<0.000000e+00> : vector<2x8x8xf32>
    %104 = tpu.matmul %101, %102, %cst_36 {dimension_numbers = #tpu.dot_dimension_numbers<[2], [2], [1], [1], [0, 0, 0, 1, 1, 1], [0], [0]>} : vector<2x8x8xf32>, vector<2x8x8xf32>, vector<2x8x8xf32> -> vector<2x8x8xf32>
    "tpu.trace_stop"() : () -> ()
    %cst_37 = arith.constant 0.353553385 : f32
    %105 = vector.broadcast %cst_37 : f32 to vector<2x8x8xf32>
    %106 = arith.mulf %104, %105 : vector<2x8x8xf32>
    %107 = vector.broadcast %17 : vector<1x8x8xf32> to vector<2x8x8xf32>
    %108 = arith.addf %106, %107 : vector<2x8x8xf32>
    %cst_38 = arith.constant dense<0xFF800000> : vector<2x8xf32>
    %109 = vector.multi_reduction <maximumf>, %108, %cst_38 [2] : vector<2x8x8xf32> to vector<2x8xf32>
    %110 = vector.shape_cast %109 : vector<2x8xf32> to vector<2x8x1xf32>
    %111 = vector.broadcast %110 : vector<2x8x1xf32> to vector<2x8x8xf32>
    %112 = arith.subf %108, %111 : vector<2x8x8xf32>
    %113 = math.exp %112 : vector<2x8x8xf32>
    %cst_39 = arith.constant dense<0.000000e+00> : vector<2x8xf32>
    %114 = vector.multi_reduction <add>, %113, %cst_39 [2] : vector<2x8x8xf32> to vector<2x8xf32>
    %115 = vector.shape_cast %114 : vector<2x8xf32> to vector<2x8x1xf32>
    %116 = tpu.reciprocal %115 {approx = true} : vector<2x8x1xf32> -> vector<2x8x1xf32>
    %117 = vector.broadcast %116 : vector<2x8x1xf32> to vector<2x8x8xf32>
    %118 = arith.mulf %113, %117 : vector<2x8x8xf32>
    "tpu.trace_start"() <{level = 10 : i32, message = "bts,bsd->btd"}> : () -> ()
    %cst_40 = arith.constant dense<0.000000e+00> : vector<2x8x8xf32>
    %119 = tpu.matmul %118, %103, %cst_40 {dimension_numbers = #tpu.dot_dimension_numbers<[2], [1], [1], [2], [0, 0, 0, 1, 1, 2], [0], [0]>} : vector<2x8x8xf32>, vector<2x8x8xf32>, vector<2x8x8xf32> -> vector<2x8x8xf32>
    "tpu.trace_stop"() : () -> ()
    %120 = vector.shape_cast %119 : vector<2x8x8xf32> to vector<16x8xf32>
    %121 = vector.extract_strided_slice %53 {offsets = [16, 0], sizes = [8, 32], strides = [1, 1]} : vector<32x32xf32> to vector<8x32xf32>
    %cst_41 = arith.constant dense<0.000000e+00> : vector<16x32xf32>
    %122 = tpu.matmul %120, %121, %cst_41 {dimension_numbers = #tpu.dot_dimension_numbers<[1], [0], [0], [1], [0, 0, 1, 1], [], []>} : vector<16x8xf32>, vector<8x32xf32>, vector<16x32xf32> -> vector<16x32xf32>
    %123 = arith.addf %100, %122 : vector<16x32xf32>
    %124 = vector.extract_strided_slice %48 {offsets = [0, 0, 24], sizes = [2, 8, 8], strides = [1, 1, 1]} : vector<2x8x32xf32> to vector<2x8x8xf32>
    %125 = vector.extract_strided_slice %50 {offsets = [0, 0, 24], sizes = [2, 8, 8], strides = [1, 1, 1]} : vector<2x8x32xf32> to vector<2x8x8xf32>
    %126 = vector.extract_strided_slice %52 {offsets = [0, 0, 24], sizes = [2, 8, 8], strides = [1, 1, 1]} : vector<2x8x32xf32> to vector<2x8x8xf32>
    "tpu.trace_start"() <{level = 10 : i32, message = "btd,bsd->bts"}> : () -> ()
    %cst_42 = arith.constant dense<0.000000e+00> : vector<2x8x8xf32>
    %127 = tpu.matmul %124, %125, %cst_42 {dimension_numbers = #tpu.dot_dimension_numbers<[2], [2], [1], [1], [0, 0, 0, 1, 1, 1], [0], [0]>} : vector<2x8x8xf32>, vector<2x8x8xf32>, vector<2x8x8xf32> -> vector<2x8x8xf32>
    "tpu.trace_stop"() : () -> ()
    %cst_43 = arith.constant 0.353553385 : f32
    %128 = vector.broadcast %cst_43 : f32 to vector<2x8x8xf32>
    %129 = arith.mulf %127, %128 : vector<2x8x8xf32>
    %130 = vector.broadcast %17 : vector<1x8x8xf32> to vector<2x8x8xf32>
    %131 = arith.addf %129, %130 : vector<2x8x8xf32>
    %cst_44 = arith.constant dense<0xFF800000> : vector<2x8xf32>
    %132 = vector.multi_reduction <maximumf>, %131, %cst_44 [2] : vector<2x8x8xf32> to vector<2x8xf32>
    %133 = vector.shape_cast %132 : vector<2x8xf32> to vector<2x8x1xf32>
    %134 = vector.broadcast %133 : vector<2x8x1xf32> to vector<2x8x8xf32>
    %135 = arith.subf %131, %134 : vector<2x8x8xf32>
    %136 = math.exp %135 : vector<2x8x8xf32>
    %cst_45 = arith.constant dense<0.000000e+00> : vector<2x8xf32>
    %137 = vector.multi_reduction <add>, %136, %cst_45 [2] : vector<2x8x8xf32> to vector<2x8xf32>
    %138 = vector.shape_cast %137 : vector<2x8xf32> to vector<2x8x1xf32>
    %139 = tpu.reciprocal %138 {approx = true} : vector<2x8x1xf32> -> vector<2x8x1xf32>
    %140 = vector.broadcast %139 : vector<2x8x1xf32> to vector<2x8x8xf32>
    %141 = arith.mulf %136, %140 : vector<2x8x8xf32>
    "tpu.trace_start"() <{level = 10 : i32, message = "bts,bsd->btd"}> : () -> ()
    %cst_46 = arith.constant dense<0.000000e+00> : vector<2x8x8xf32>
    %142 = tpu.matmul %141, %126, %cst_46 {dimension_numbers = #tpu.dot_dimension_numbers<[2], [1], [1], [2], [0, 0, 0, 1, 1, 2], [0], [0]>} : vector<2x8x8xf32>, vector<2x8x8xf32>, vector<2x8x8xf32> -> vector<2x8x8xf32>
    "tpu.trace_stop"() : () -> ()
    %143 = vector.shape_cast %142 : vector<2x8x8xf32> to vector<16x8xf32>
    %144 = vector.extract_strided_slice %53 {offsets = [24, 0], sizes = [8, 32], strides = [1, 1]} : vector<32x32xf32> to vector<8x32xf32>
    %cst_47 = arith.constant dense<0.000000e+00> : vector<16x32xf32>
    %145 = tpu.matmul %143, %144, %cst_47 {dimension_numbers = #tpu.dot_dimension_numbers<[1], [0], [0], [1], [0, 0, 1, 1], [], []>} : vector<16x8xf32>, vector<8x32xf32>, vector<16x32xf32> -> vector<16x32xf32>
    %146 = arith.addf %123, %145 : vector<16x32xf32>
    %147 = arith.addf %10, %146 : vector<16x32xf32>
    %c0_48 = arith.constant 0 : index
    %c0_49 = arith.constant 0 : index
    %148 = vector.load %arg8[%c0_48, %c0_49] : memref<1x32xf32, #tpu.memory_space<vmem>>, vector<1x32xf32>
    %149 = vector.broadcast %148 : vector<1x32xf32> to vector<16x32xf32>
    %150 = arith.addf %147, %149 : vector<16x32xf32>
    %c0_50 = arith.constant 0 : index
    %c0_51 = arith.constant 0 : index
    %151 = vector.load %arg9[%c0_50, %c0_51] : memref<1x32xf32, #tpu.memory_space<vmem>>, vector<1x32xf32>
    %c0_52 = arith.constant 0 : index
    %c0_53 = arith.constant 0 : index
    %152 = vector.load %arg10[%c0_52, %c0_53] : memref<1x32xf32, #tpu.memory_space<vmem>>, vector<1x32xf32>
    %cst_54 = arith.constant dense<0.000000e+00> : vector<16xf32>
    %153 = vector.multi_reduction <add>, %150, %cst_54 [1] : vector<16x32xf32> to vector<16xf32>
    %154 = vector.shape_cast %153 : vector<16xf32> to vector<16x1xf32>
    %cst_55 = arith.constant 3.200000e+01 : f32
    %155 = vector.broadcast %cst_55 : f32 to vector<16x1xf32>
    %156 = arith.divf %154, %155 : vector<16x1xf32>
    %157 = vector.broadcast %156 : vector<16x1xf32> to vector<16x32xf32>
    %158 = arith.subf %150, %157 : vector<16x32xf32>
    %159 = arith.mulf %158, %158 : vector<16x32xf32>
    %cst_56 = arith.constant dense<0.000000e+00> : vector<16xf32>
    %160 = vector.multi_reduction <add>, %159, %cst_56 [1] : vector<16x32xf32> to vector<16xf32>
    %161 = vector.shape_cast %160 : vector<16xf32> to vector<16x1xf32>
    %cst_57 = arith.constant 3.200000e+01 : f32
    %162 = vector.broadcast %cst_57 : f32 to vector<16x1xf32>
    %163 = arith.divf %161, %162 : vector<16x1xf32>
    %164 = vector.broadcast %156 : vector<16x1xf32> to vector<16x32xf32>
    %165 = arith.subf %150, %164 : vector<16x32xf32>
    %cst_58 = arith.constant 9.99999974E-6 : f32
    %166 = vector.broadcast %cst_58 : f32 to vector<16x1xf32>
    %167 = arith.addf %163, %166 : vector<16x1xf32>
    %168 = math.rsqrt %167 : vector<16x1xf32>
    %169 = vector.broadcast %168 : vector<16x1xf32> to vector<16x32xf32>
    %170 = arith.mulf %165, %169 : vector<16x32xf32>
    %171 = vector.broadcast %151 : vector<1x32xf32> to vector<16x32xf32>
    %172 = arith.mulf %170, %171 : vector<16x32xf32>
    %173 = vector.broadcast %152 : vector<1x32xf32> to vector<16x32xf32>
    %174 = arith.addf %172, %173 : vector<16x32xf32>
    %c0_59 = arith.constant 0 : index
    %c0_60 = arith.constant 0 : index
    %175 = vector.load %arg11[%c0_59, %c0_60] : memref<32x128xf32, #tpu.memory_space<vmem>>, vector<32x128xf32>
    %cst_61 = arith.constant dense<0.000000e+00> : vector<16x128xf32>
    %176 = tpu.matmul %174, %175, %cst_61 {dimension_numbers = #tpu.dot_dimension_numbers<[1], [0], [0], [1], [0, 0, 1, 1], [], []>} : vector<16x32xf32>, vector<32x128xf32>, vector<16x128xf32> -> vector<16x128xf32>
    %c0_62 = arith.constant 0 : index
    %c0_63 = arith.constant 0 : index
    %177 = vector.load %arg12[%c0_62, %c0_63] : memref<1x128xf32, #tpu.memory_space<vmem>>, vector<1x128xf32>
    %178 = vector.broadcast %177 : vector<1x128xf32> to vector<16x128xf32>
    %179 = arith.addf %176, %178 : vector<16x128xf32>
    %cst_64 = arith.constant 5.000000e-01 : f32
    %180 = vector.broadcast %cst_64 : f32 to vector<16x128xf32>
    %181 = arith.mulf %180, %179 : vector<16x128xf32>
    %cst_65 = arith.constant 4.471500e-02 : f32
    %182 = vector.broadcast %cst_65 : f32 to vector<16x128xf32>
    %183 = arith.mulf %182, %179 : vector<16x128xf32>
    %184 = arith.mulf %183, %179 : vector<16x128xf32>
    %185 = arith.mulf %184, %179 : vector<16x128xf32>
    %186 = arith.addf %179, %185 : vector<16x128xf32>
    %cst_66 = arith.constant 0.797884583 : f32
    %187 = vector.broadcast %cst_66 : f32 to vector<16x128xf32>
    %188 = arith.mulf %187, %186 : vector<16x128xf32>
    %189 = math.tanh %188 : vector<16x128xf32>
    %cst_67 = arith.constant 1.000000e+00 : f32
    %190 = vector.broadcast %cst_67 : f32 to vector<16x128xf32>
    %191 = arith.addf %190, %189 : vector<16x128xf32>
    %192 = arith.mulf %181, %191 : vector<16x128xf32>
    %c0_68 = arith.constant 0 : index
    %c0_69 = arith.constant 0 : index
    %193 = vector.load %arg13[%c0_68, %c0_69] : memref<128x32xf32, #tpu.memory_space<vmem>>, vector<128x32xf32>
    %cst_70 = arith.constant dense<0.000000e+00> : vector<16x32xf32>
    %194 = tpu.matmul %192, %193, %cst_70 {dimension_numbers = #tpu.dot_dimension_numbers<[1], [0], [0], [1], [0, 0, 1, 1], [], []>} : vector<16x128xf32>, vector<128x32xf32>, vector<16x32xf32> -> vector<16x32xf32>
    %c0_71 = arith.constant 0 : index
    %c0_72 = arith.constant 0 : index
    %195 = vector.load %arg14[%c0_71, %c0_72] : memref<1x32xf32, #tpu.memory_space<vmem>>, vector<1x32xf32>
    %196 = vector.broadcast %195 : vector<1x32xf32> to vector<16x32xf32>
    %197 = arith.addf %194, %196 : vector<16x32xf32>
    %198 = arith.addf %150, %197 : vector<16x32xf32>
    %c0_73 = arith.constant 0 : index
    %c0_74 = arith.constant 0 : index
    %199 = vector.load %arg15[%c0_73, %c0_74] : memref<1x32xf32, #tpu.memory_space<vmem>>, vector<1x32xf32>
    %c0_75 = arith.constant 0 : index
    %c0_76 = arith.constant 0 : index
    %200 = vector.load %arg16[%c0_75, %c0_76] : memref<1x32xf32, #tpu.memory_space<vmem>>, vector<1x32xf32>
    %cst_77 = arith.constant dense<0.000000e+00> : vector<16xf32>
    %201 = vector.multi_reduction <add>, %198, %cst_77 [1] : vector<16x32xf32> to vector<16xf32>
    %202 = vector.shape_cast %201 : vector<16xf32> to vector<16x1xf32>
    %cst_78 = arith.constant 3.200000e+01 : f32
    %203 = vector.broadcast %cst_78 : f32 to vector<16x1xf32>
    %204 = arith.divf %202, %203 : vector<16x1xf32>
    %205 = vector.broadcast %204 : vector<16x1xf32> to vector<16x32xf32>
    %206 = arith.subf %198, %205 : vector<16x32xf32>
    %207 = arith.mulf %206, %206 : vector<16x32xf32>
    %cst_79 = arith.constant dense<0.000000e+00> : vector<16xf32>
    %208 = vector.multi_reduction <add>, %207, %cst_79 [1] : vector<16x32xf32> to vector<16xf32>
    %209 = vector.shape_cast %208 : vector<16xf32> to vector<16x1xf32>
    %cst_80 = arith.constant 3.200000e+01 : f32
    %210 = vector.broadcast %cst_80 : f32 to vector<16x1xf32>
    %211 = arith.divf %209, %210 : vector<16x1xf32>
    %212 = vector.broadcast %204 : vector<16x1xf32> to vector<16x32xf32>
    %213 = arith.subf %198, %212 : vector<16x32xf32>
    %cst_81 = arith.constant 9.99999974E-6 : f32
    %214 = vector.broadcast %cst_81 : f32 to vector<16x1xf32>
    %215 = arith.addf %211, %214 : vector<16x1xf32>
    %216 = math.rsqrt %215 : vector<16x1xf32>
    %217 = vector.broadcast %216 : vector<16x1xf32> to vector<16x32xf32>
    %218 = arith.mulf %213, %217 : vector<16x32xf32>
    %219 = vector.broadcast %199 : vector<1x32xf32> to vector<16x32xf32>
    %220 = arith.mulf %218, %219 : vector<16x32xf32>
    %221 = vector.broadcast %200 : vector<1x32xf32> to vector<16x32xf32>
    %222 = arith.addf %220, %221 : vector<16x32xf32>
    %c0_82 = arith.constant 0 : index
    %c0_83 = arith.constant 0 : index
    %223 = vector.load %arg17[%c0_82, %c0_83] : memref<32x96xf32, #tpu.memory_space<vmem>>, vector<32x96xf32>
    %cst_84 = arith.constant dense<0.000000e+00> : vector<16x96xf32>
    %224 = tpu.matmul %222, %223, %cst_84 {dimension_numbers = #tpu.dot_dimension_numbers<[1], [0], [0], [1], [0, 0, 1, 1], [], []>} : vector<16x32xf32>, vector<32x96xf32>, vector<16x96xf32> -> vector<16x96xf32>
    %c0_85 = arith.constant 0 : index
    %c0_86 = arith.constant 0 : index
    %225 = vector.load %arg18[%c0_85, %c0_86] : memref<1x96xf32, #tpu.memory_space<vmem>>, vector<1x96xf32>
    %226 = vector.broadcast %225 : vector<1x96xf32> to vector<16x96xf32>
    %227 = arith.addf %224, %226 : vector<16x96xf32>
    %228 = vector.extract_strided_slice %227 {offsets = [0, 0], sizes = [16, 32], strides = [1, 1]} : vector<16x96xf32> to vector<16x32xf32>
    %229 = vector.shape_cast %228 : vector<16x32xf32> to vector<2x8x32xf32>
    %230 = vector.extract_strided_slice %227 {offsets = [0, 32], sizes = [16, 32], strides = [1, 1]} : vector<16x96xf32> to vector<16x32xf32>
    %231 = vector.shape_cast %230 : vector<16x32xf32> to vector<2x8x32xf32>
    %232 = vector.extract_strided_slice %227 {offsets = [0, 64], sizes = [16, 32], strides = [1, 1]} : vector<16x96xf32> to vector<16x32xf32>
    %233 = vector.shape_cast %232 : vector<16x32xf32> to vector<2x8x32xf32>
    %c0_87 = arith.constant 0 : index
    %c0_88 = arith.constant 0 : index
    %234 = vector.load %arg19[%c0_87, %c0_88] : memref<32x32xf32, #tpu.memory_space<vmem>>, vector<32x32xf32>
    %cst_89 = arith.constant 0.000000e+00 : f32
    %235 = vector.broadcast %cst_89 : f32 to vector<16x32xf32>
    %236 = vector.extract_strided_slice %229 {offsets = [0, 0, 0], sizes = [2, 8, 8], strides = [1, 1, 1]} : vector<2x8x32xf32> to vector<2x8x8xf32>
    %237 = vector.extract_strided_slice %231 {offsets = [0, 0, 0], sizes = [2, 8, 8], strides = [1, 1, 1]} : vector<2x8x32xf32> to vector<2x8x8xf32>
    %238 = vector.extract_strided_slice %233 {offsets = [0, 0, 0], sizes = [2, 8, 8], strides = [1, 1, 1]} : vector<2x8x32xf32> to vector<2x8x8xf32>
    "tpu.trace_start"() <{level = 10 : i32, message = "btd,bsd->bts"}> : () -> ()
    %cst_90 = arith.constant dense<0.000000e+00> : vector<2x8x8xf32>
    %239 = tpu.matmul %236, %237, %cst_90 {dimension_numbers = #tpu.dot_dimension_numbers<[2], [2], [1], [1], [0, 0, 0, 1, 1, 1], [0], [0]>} : vector<2x8x8xf32>, vector<2x8x8xf32>, vector<2x8x8xf32> -> vector<2x8x8xf32>
    "tpu.trace_stop"() : () -> ()
    %cst_91 = arith.constant 0.353553385 : f32
    %240 = vector.broadcast %cst_91 : f32 to vector<2x8x8xf32>
    %241 = arith.mulf %239, %240 : vector<2x8x8xf32>
    %242 = vector.broadcast %17 : vector<1x8x8xf32> to vector<2x8x8xf32>
    %243 = arith.addf %241, %242 : vector<2x8x8xf32>
    %cst_92 = arith.constant dense<0xFF800000> : vector<2x8xf32>
    %244 = vector.multi_reduction <maximumf>, %243, %cst_92 [2] : vector<2x8x8xf32> to vector<2x8xf32>
    %245 = vector.shape_cast %244 : vector<2x8xf32> to vector<2x8x1xf32>
    %246 = vector.broadcast %245 : vector<2x8x1xf32> to vector<2x8x8xf32>
    %247 = arith.subf %243, %246 : vector<2x8x8xf32>
    %248 = math.exp %247 : vector<2x8x8xf32>
    %cst_93 = arith.constant dense<0.000000e+00> : vector<2x8xf32>
    %249 = vector.multi_reduction <add>, %248, %cst_93 [2] : vector<2x8x8xf32> to vector<2x8xf32>
    %250 = vector.shape_cast %249 : vector<2x8xf32> to vector<2x8x1xf32>
    %251 = tpu.reciprocal %250 {approx = true} : vector<2x8x1xf32> -> vector<2x8x1xf32>
    %252 = vector.broadcast %251 : vector<2x8x1xf32> to vector<2x8x8xf32>
    %253 = arith.mulf %248, %252 : vector<2x8x8xf32>
    "tpu.trace_start"() <{level = 10 : i32, message = "bts,bsd->btd"}> : () -> ()
    %cst_94 = arith.constant dense<0.000000e+00> : vector<2x8x8xf32>
    %254 = tpu.matmul %253, %238, %cst_94 {dimension_numbers = #tpu.dot_dimension_numbers<[2], [1], [1], [2], [0, 0, 0, 1, 1, 2], [0], [0]>} : vector<2x8x8xf32>, vector<2x8x8xf32>, vector<2x8x8xf32> -> vector<2x8x8xf32>
    "tpu.trace_stop"() : () -> ()
    %255 = vector.shape_cast %254 : vector<2x8x8xf32> to vector<16x8xf32>
    %256 = vector.extract_strided_slice %234 {offsets = [0, 0], sizes = [8, 32], strides = [1, 1]} : vector<32x32xf32> to vector<8x32xf32>
    %cst_95 = arith.constant dense<0.000000e+00> : vector<16x32xf32>
    %257 = tpu.matmul %255, %256, %cst_95 {dimension_numbers = #tpu.dot_dimension_numbers<[1], [0], [0], [1], [0, 0, 1, 1], [], []>} : vector<16x8xf32>, vector<8x32xf32>, vector<16x32xf32> -> vector<16x32xf32>
    %258 = arith.addf %235, %257 : vector<16x32xf32>
    %259 = vector.extract_strided_slice %229 {offsets = [0, 0, 8], sizes = [2, 8, 8], strides = [1, 1, 1]} : vector<2x8x32xf32> to vector<2x8x8xf32>
    %260 = vector.extract_strided_slice %231 {offsets = [0, 0, 8], sizes = [2, 8, 8], strides = [1, 1, 1]} : vector<2x8x32xf32> to vector<2x8x8xf32>
    %261 = vector.extract_strided_slice %233 {offsets = [0, 0, 8], sizes = [2, 8, 8], strides = [1, 1, 1]} : vector<2x8x32xf32> to vector<2x8x8xf32>
    "tpu.trace_start"() <{level = 10 : i32, message = "btd,bsd->bts"}> : () -> ()
    %cst_96 = arith.constant dense<0.000000e+00> : vector<2x8x8xf32>
    %262 = tpu.matmul %259, %260, %cst_96 {dimension_numbers = #tpu.dot_dimension_numbers<[2], [2], [1], [1], [0, 0, 0, 1, 1, 1], [0], [0]>} : vector<2x8x8xf32>, vector<2x8x8xf32>, vector<2x8x8xf32> -> vector<2x8x8xf32>
    "tpu.trace_stop"() : () -> ()
    %cst_97 = arith.constant 0.353553385 : f32
    %263 = vector.broadcast %cst_97 : f32 to vector<2x8x8xf32>
    %264 = arith.mulf %262, %263 : vector<2x8x8xf32>
    %265 = vector.broadcast %17 : vector<1x8x8xf32> to vector<2x8x8xf32>
    %266 = arith.addf %264, %265 : vector<2x8x8xf32>
    %cst_98 = arith.constant dense<0xFF800000> : vector<2x8xf32>
    %267 = vector.multi_reduction <maximumf>, %266, %cst_98 [2] : vector<2x8x8xf32> to vector<2x8xf32>
    %268 = vector.shape_cast %267 : vector<2x8xf32> to vector<2x8x1xf32>
    %269 = vector.broadcast %268 : vector<2x8x1xf32> to vector<2x8x8xf32>
    %270 = arith.subf %266, %269 : vector<2x8x8xf32>
    %271 = math.exp %270 : vector<2x8x8xf32>
    %cst_99 = arith.constant dense<0.000000e+00> : vector<2x8xf32>
    %272 = vector.multi_reduction <add>, %271, %cst_99 [2] : vector<2x8x8xf32> to vector<2x8xf32>
    %273 = vector.shape_cast %272 : vector<2x8xf32> to vector<2x8x1xf32>
    %274 = tpu.reciprocal %273 {approx = true} : vector<2x8x1xf32> -> vector<2x8x1xf32>
    %275 = vector.broadcast %274 : vector<2x8x1xf32> to vector<2x8x8xf32>
    %276 = arith.mulf %271, %275 : vector<2x8x8xf32>
    "tpu.trace_start"() <{level = 10 : i32, message = "bts,bsd->btd"}> : () -> ()
    %cst_100 = arith.constant dense<0.000000e+00> : vector<2x8x8xf32>
    %277 = tpu.matmul %276, %261, %cst_100 {dimension_numbers = #tpu.dot_dimension_numbers<[2], [1], [1], [2], [0, 0, 0, 1, 1, 2], [0], [0]>} : vector<2x8x8xf32>, vector<2x8x8xf32>, vector<2x8x8xf32> -> vector<2x8x8xf32>
    "tpu.trace_stop"() : () -> ()
    %278 = vector.shape_cast %277 : vector<2x8x8xf32> to vector<16x8xf32>
    %279 = vector.extract_strided_slice %234 {offsets = [8, 0], sizes = [8, 32], strides = [1, 1]} : vector<32x32xf32> to vector<8x32xf32>
    %cst_101 = arith.constant dense<0.000000e+00> : vector<16x32xf32>
    %280 = tpu.matmul %278, %279, %cst_101 {dimension_numbers = #tpu.dot_dimension_numbers<[1], [0], [0], [1], [0, 0, 1, 1], [], []>} : vector<16x8xf32>, vector<8x32xf32>, vector<16x32xf32> -> vector<16x32xf32>
    %281 = arith.addf %258, %280 : vector<16x32xf32>
    %282 = vector.extract_strided_slice %229 {offsets = [0, 0, 16], sizes = [2, 8, 8], strides = [1, 1, 1]} : vector<2x8x32xf32> to vector<2x8x8xf32>
    %283 = vector.extract_strided_slice %231 {offsets = [0, 0, 16], sizes = [2, 8, 8], strides = [1, 1, 1]} : vector<2x8x32xf32> to vector<2x8x8xf32>
    %284 = vector.extract_strided_slice %233 {offsets = [0, 0, 16], sizes = [2, 8, 8], strides = [1, 1, 1]} : vector<2x8x32xf32> to vector<2x8x8xf32>
    "tpu.trace_start"() <{level = 10 : i32, message = "btd,bsd->bts"}> : () -> ()
    %cst_102 = arith.constant dense<0.000000e+00> : vector<2x8x8xf32>
    %285 = tpu.matmul %282, %283, %cst_102 {dimension_numbers = #tpu.dot_dimension_numbers<[2], [2], [1], [1], [0, 0, 0, 1, 1, 1], [0], [0]>} : vector<2x8x8xf32>, vector<2x8x8xf32>, vector<2x8x8xf32> -> vector<2x8x8xf32>
    "tpu.trace_stop"() : () -> ()
    %cst_103 = arith.constant 0.353553385 : f32
    %286 = vector.broadcast %cst_103 : f32 to vector<2x8x8xf32>
    %287 = arith.mulf %285, %286 : vector<2x8x8xf32>
    %288 = vector.broadcast %17 : vector<1x8x8xf32> to vector<2x8x8xf32>
    %289 = arith.addf %287, %288 : vector<2x8x8xf32>
    %cst_104 = arith.constant dense<0xFF800000> : vector<2x8xf32>
    %290 = vector.multi_reduction <maximumf>, %289, %cst_104 [2] : vector<2x8x8xf32> to vector<2x8xf32>
    %291 = vector.shape_cast %290 : vector<2x8xf32> to vector<2x8x1xf32>
    %292 = vector.broadcast %291 : vector<2x8x1xf32> to vector<2x8x8xf32>
    %293 = arith.subf %289, %292 : vector<2x8x8xf32>
    %294 = math.exp %293 : vector<2x8x8xf32>
    %cst_105 = arith.constant dense<0.000000e+00> : vector<2x8xf32>
    %295 = vector.multi_reduction <add>, %294, %cst_105 [2] : vector<2x8x8xf32> to vector<2x8xf32>
    %296 = vector.shape_cast %295 : vector<2x8xf32> to vector<2x8x1xf32>
    %297 = tpu.reciprocal %296 {approx = true} : vector<2x8x1xf32> -> vector<2x8x1xf32>
    %298 = vector.broadcast %297 : vector<2x8x1xf32> to vector<2x8x8xf32>
    %299 = arith.mulf %294, %298 : vector<2x8x8xf32>
    "tpu.trace_start"() <{level = 10 : i32, message = "bts,bsd->btd"}> : () -> ()
    %cst_106 = arith.constant dense<0.000000e+00> : vector<2x8x8xf32>
    %300 = tpu.matmul %299, %284, %cst_106 {dimension_numbers = #tpu.dot_dimension_numbers<[2], [1], [1], [2], [0, 0, 0, 1, 1, 2], [0], [0]>} : vector<2x8x8xf32>, vector<2x8x8xf32>, vector<2x8x8xf32> -> vector<2x8x8xf32>
    "tpu.trace_stop"() : () -> ()
    %301 = vector.shape_cast %300 : vector<2x8x8xf32> to vector<16x8xf32>
    %302 = vector.extract_strided_slice %234 {offsets = [16, 0], sizes = [8, 32], strides = [1, 1]} : vector<32x32xf32> to vector<8x32xf32>
    %cst_107 = arith.constant dense<0.000000e+00> : vector<16x32xf32>
    %303 = tpu.matmul %301, %302, %cst_107 {dimension_numbers = #tpu.dot_dimension_numbers<[1], [0], [0], [1], [0, 0, 1, 1], [], []>} : vector<16x8xf32>, vector<8x32xf32>, vector<16x32xf32> -> vector<16x32xf32>
    %304 = arith.addf %281, %303 : vector<16x32xf32>
    %305 = vector.extract_strided_slice %229 {offsets = [0, 0, 24], sizes = [2, 8, 8], strides = [1, 1, 1]} : vector<2x8x32xf32> to vector<2x8x8xf32>
    %306 = vector.extract_strided_slice %231 {offsets = [0, 0, 24], sizes = [2, 8, 8], strides = [1, 1, 1]} : vector<2x8x32xf32> to vector<2x8x8xf32>
    %307 = vector.extract_strided_slice %233 {offsets = [0, 0, 24], sizes = [2, 8, 8], strides = [1, 1, 1]} : vector<2x8x32xf32> to vector<2x8x8xf32>
    "tpu.trace_start"() <{level = 10 : i32, message = "btd,bsd->bts"}> : () -> ()
    %cst_108 = arith.constant dense<0.000000e+00> : vector<2x8x8xf32>
    %308 = tpu.matmul %305, %306, %cst_108 {dimension_numbers = #tpu.dot_dimension_numbers<[2], [2], [1], [1], [0, 0, 0, 1, 1, 1], [0], [0]>} : vector<2x8x8xf32>, vector<2x8x8xf32>, vector<2x8x8xf32> -> vector<2x8x8xf32>
    "tpu.trace_stop"() : () -> ()
    %cst_109 = arith.constant 0.353553385 : f32
    %309 = vector.broadcast %cst_109 : f32 to vector<2x8x8xf32>
    %310 = arith.mulf %308, %309 : vector<2x8x8xf32>
    %311 = vector.broadcast %17 : vector<1x8x8xf32> to vector<2x8x8xf32>
    %312 = arith.addf %310, %311 : vector<2x8x8xf32>
    %cst_110 = arith.constant dense<0xFF800000> : vector<2x8xf32>
    %313 = vector.multi_reduction <maximumf>, %312, %cst_110 [2] : vector<2x8x8xf32> to vector<2x8xf32>
    %314 = vector.shape_cast %313 : vector<2x8xf32> to vector<2x8x1xf32>
    %315 = vector.broadcast %314 : vector<2x8x1xf32> to vector<2x8x8xf32>
    %316 = arith.subf %312, %315 : vector<2x8x8xf32>
    %317 = math.exp %316 : vector<2x8x8xf32>
    %cst_111 = arith.constant dense<0.000000e+00> : vector<2x8xf32>
    %318 = vector.multi_reduction <add>, %317, %cst_111 [2] : vector<2x8x8xf32> to vector<2x8xf32>
    %319 = vector.shape_cast %318 : vector<2x8xf32> to vector<2x8x1xf32>
    %320 = tpu.reciprocal %319 {approx = true} : vector<2x8x1xf32> -> vector<2x8x1xf32>
    %321 = vector.broadcast %320 : vector<2x8x1xf32> to vector<2x8x8xf32>
    %322 = arith.mulf %317, %321 : vector<2x8x8xf32>
    "tpu.trace_start"() <{level = 10 : i32, message = "bts,bsd->btd"}> : () -> ()
    %cst_112 = arith.constant dense<0.000000e+00> : vector<2x8x8xf32>
    %323 = tpu.matmul %322, %307, %cst_112 {dimension_numbers = #tpu.dot_dimension_numbers<[2], [1], [1], [2], [0, 0, 0, 1, 1, 2], [0], [0]>} : vector<2x8x8xf32>, vector<2x8x8xf32>, vector<2x8x8xf32> -> vector<2x8x8xf32>
    "tpu.trace_stop"() : () -> ()
    %324 = vector.shape_cast %323 : vector<2x8x8xf32> to vector<16x8xf32>
    %325 = vector.extract_strided_slice %234 {offsets = [24, 0], sizes = [8, 32], strides = [1, 1]} : vector<32x32xf32> to vector<8x32xf32>
    %cst_113 = arith.constant dense<0.000000e+00> : vector<16x32xf32>
    %326 = tpu.matmul %324, %325, %cst_113 {dimension_numbers = #tpu.dot_dimension_numbers<[1], [0], [0], [1], [0, 0, 1, 1], [], []>} : vector<16x8xf32>, vector<8x32xf32>, vector<16x32xf32> -> vector<16x32xf32>
    %327 = arith.addf %304, %326 : vector<16x32xf32>
    %328 = arith.addf %198, %327 : vector<16x32xf32>
    %c0_114 = arith.constant 0 : index
    %c0_115 = arith.constant 0 : index
    %329 = vector.load %arg20[%c0_114, %c0_115] : memref<1x32xf32, #tpu.memory_space<vmem>>, vector<1x32xf32>
    %330 = vector.broadcast %329 : vector<1x32xf32> to vector<16x32xf32>
    %331 = arith.addf %328, %330 : vector<16x32xf32>
    %c0_116 = arith.constant 0 : index
    %c0_117 = arith.constant 0 : index
    %332 = vector.load %arg21[%c0_116, %c0_117] : memref<1x32xf32, #tpu.memory_space<vmem>>, vector<1x32xf32>
    %c0_118 = arith.constant 0 : index
    %c0_119 = arith.constant 0 : index
    %333 = vector.load %arg22[%c0_118, %c0_119] : memref<1x32xf32, #tpu.memory_space<vmem>>, vector<1x32xf32>
    %cst_120 = arith.constant dense<0.000000e+00> : vector<16xf32>
    %334 = vector.multi_reduction <add>, %331, %cst_120 [1] : vector<16x32xf32> to vector<16xf32>
    %335 = vector.shape_cast %334 : vector<16xf32> to vector<16x1xf32>
    %cst_121 = arith.constant 3.200000e+01 : f32
    %336 = vector.broadcast %cst_121 : f32 to vector<16x1xf32>
    %337 = arith.divf %335, %336 : vector<16x1xf32>
    %338 = vector.broadcast %337 : vector<16x1xf32> to vector<16x32xf32>
    %339 = arith.subf %331, %338 : vector<16x32xf32>
    %340 = arith.mulf %339, %339 : vector<16x32xf32>
    %cst_122 = arith.constant dense<0.000000e+00> : vector<16xf32>
    %341 = vector.multi_reduction <add>, %340, %cst_122 [1] : vector<16x32xf32> to vector<16xf32>
    %342 = vector.shape_cast %341 : vector<16xf32> to vector<16x1xf32>
    %cst_123 = arith.constant 3.200000e+01 : f32
    %343 = vector.broadcast %cst_123 : f32 to vector<16x1xf32>
    %344 = arith.divf %342, %343 : vector<16x1xf32>
    %345 = vector.broadcast %337 : vector<16x1xf32> to vector<16x32xf32>
    %346 = arith.subf %331, %345 : vector<16x32xf32>
    %cst_124 = arith.constant 9.99999974E-6 : f32
    %347 = vector.broadcast %cst_124 : f32 to vector<16x1xf32>
    %348 = arith.addf %344, %347 : vector<16x1xf32>
    %349 = math.rsqrt %348 : vector<16x1xf32>
    %350 = vector.broadcast %349 : vector<16x1xf32> to vector<16x32xf32>
    %351 = arith.mulf %346, %350 : vector<16x32xf32>
    %352 = vector.broadcast %332 : vector<1x32xf32> to vector<16x32xf32>
    %353 = arith.mulf %351, %352 : vector<16x32xf32>
    %354 = vector.broadcast %333 : vector<1x32xf32> to vector<16x32xf32>
    %355 = arith.addf %353, %354 : vector<16x32xf32>
    %c0_125 = arith.constant 0 : index
    %c0_126 = arith.constant 0 : index
    %356 = vector.load %arg23[%c0_125, %c0_126] : memref<32x128xf32, #tpu.memory_space<vmem>>, vector<32x128xf32>
    %cst_127 = arith.constant dense<0.000000e+00> : vector<16x128xf32>
    %357 = tpu.matmul %355, %356, %cst_127 {dimension_numbers = #tpu.dot_dimension_numbers<[1], [0], [0], [1], [0, 0, 1, 1], [], []>} : vector<16x32xf32>, vector<32x128xf32>, vector<16x128xf32> -> vector<16x128xf32>
    %c0_128 = arith.constant 0 : index
    %c0_129 = arith.constant 0 : index
    %358 = vector.load %arg24[%c0_128, %c0_129] : memref<1x128xf32, #tpu.memory_space<vmem>>, vector<1x128xf32>
    %359 = vector.broadcast %358 : vector<1x128xf32> to vector<16x128xf32>
    %360 = arith.addf %357, %359 : vector<16x128xf32>
    %cst_130 = arith.constant 5.000000e-01 : f32
    %361 = vector.broadcast %cst_130 : f32 to vector<16x128xf32>
    %362 = arith.mulf %361, %360 : vector<16x128xf32>
    %cst_131 = arith.constant 4.471500e-02 : f32
    %363 = vector.broadcast %cst_131 : f32 to vector<16x128xf32>
    %364 = arith.mulf %363, %360 : vector<16x128xf32>
    %365 = arith.mulf %364, %360 : vector<16x128xf32>
    %366 = arith.mulf %365, %360 : vector<16x128xf32>
    %367 = arith.addf %360, %366 : vector<16x128xf32>
    %cst_132 = arith.constant 0.797884583 : f32
    %368 = vector.broadcast %cst_132 : f32 to vector<16x128xf32>
    %369 = arith.mulf %368, %367 : vector<16x128xf32>
    %370 = math.tanh %369 : vector<16x128xf32>
    %cst_133 = arith.constant 1.000000e+00 : f32
    %371 = vector.broadcast %cst_133 : f32 to vector<16x128xf32>
    %372 = arith.addf %371, %370 : vector<16x128xf32>
    %373 = arith.mulf %362, %372 : vector<16x128xf32>
    %c0_134 = arith.constant 0 : index
    %c0_135 = arith.constant 0 : index
    %374 = vector.load %arg25[%c0_134, %c0_135] : memref<128x32xf32, #tpu.memory_space<vmem>>, vector<128x32xf32>
    %cst_136 = arith.constant dense<0.000000e+00> : vector<16x32xf32>
    %375 = tpu.matmul %373, %374, %cst_136 {dimension_numbers = #tpu.dot_dimension_numbers<[1], [0], [0], [1], [0, 0, 1, 1], [], []>} : vector<16x128xf32>, vector<128x32xf32>, vector<16x32xf32> -> vector<16x32xf32>
    %c0_137 = arith.constant 0 : index
    %c0_138 = arith.constant 0 : index
    %376 = vector.load %arg26[%c0_137, %c0_138] : memref<1x32xf32, #tpu.memory_space<vmem>>, vector<1x32xf32>
    %377 = vector.broadcast %376 : vector<1x32xf32> to vector<16x32xf32>
    %378 = arith.addf %375, %377 : vector<16x32xf32>
    %379 = arith.addf %331, %378 : vector<16x32xf32>
    %c0_139 = arith.constant 0 : index
    %c0_140 = arith.constant 0 : index
    %380 = vector.load %arg27[%c0_139, %c0_140] : memref<1x32xf32, #tpu.memory_space<vmem>>, vector<1x32xf32>
    %c0_141 = arith.constant 0 : index
    %c0_142 = arith.constant 0 : index
    %381 = vector.load %arg28[%c0_141, %c0_142] : memref<1x32xf32, #tpu.memory_space<vmem>>, vector<1x32xf32>
    %cst_143 = arith.constant dense<0.000000e+00> : vector<16xf32>
    %382 = vector.multi_reduction <add>, %379, %cst_143 [1] : vector<16x32xf32> to vector<16xf32>
    %383 = vector.shape_cast %382 : vector<16xf32> to vector<16x1xf32>
    %cst_144 = arith.constant 3.200000e+01 : f32
    %384 = vector.broadcast %cst_144 : f32 to vector<16x1xf32>
    %385 = arith.divf %383, %384 : vector<16x1xf32>
    %386 = vector.broadcast %385 : vector<16x1xf32> to vector<16x32xf32>
    %387 = arith.subf %379, %386 : vector<16x32xf32>
    %388 = arith.mulf %387, %387 : vector<16x32xf32>
    %cst_145 = arith.constant dense<0.000000e+00> : vector<16xf32>
    %389 = vector.multi_reduction <add>, %388, %cst_145 [1] : vector<16x32xf32> to vector<16xf32>
    %390 = vector.shape_cast %389 : vector<16xf32> to vector<16x1xf32>
    %cst_146 = arith.constant 3.200000e+01 : f32
    %391 = vector.broadcast %cst_146 : f32 to vector<16x1xf32>
    %392 = arith.divf %390, %391 : vector<16x1xf32>
    %393 = vector.broadcast %385 : vector<16x1xf32> to vector<16x32xf32>
    %394 = arith.subf %379, %393 : vector<16x32xf32>
    %cst_147 = arith.constant 9.99999974E-6 : f32
    %395 = vector.broadcast %cst_147 : f32 to vector<16x1xf32>
    %396 = arith.addf %392, %395 : vector<16x1xf32>
    %397 = math.rsqrt %396 : vector<16x1xf32>
    %398 = vector.broadcast %397 : vector<16x1xf32> to vector<16x32xf32>
    %399 = arith.mulf %394, %398 : vector<16x32xf32>
    %400 = vector.broadcast %380 : vector<1x32xf32> to vector<16x32xf32>
    %401 = arith.mulf %399, %400 : vector<16x32xf32>
    %402 = vector.broadcast %381 : vector<1x32xf32> to vector<16x32xf32>
    %403 = arith.addf %401, %402 : vector<16x32xf32>
    %c0_148 = arith.constant 0 : index
    %c0_149 = arith.constant 0 : index
    %404 = vector.load %arg29[%c0_148, %c0_149] : memref<32x128xf32, #tpu.memory_space<vmem>>, vector<32x128xf32>
    %cst_150 = arith.constant dense<0.000000e+00> : vector<16x128xf32>
    %405 = tpu.matmul %403, %404, %cst_150 {dimension_numbers = #tpu.dot_dimension_numbers<[1], [0], [0], [1], [0, 0, 1, 1], [], []>} : vector<16x32xf32>, vector<32x128xf32>, vector<16x128xf32> -> vector<16x128xf32>
    %406 = vector.shape_cast %405 : vector<16x128xf32> to vector<2x8x128xf32>
    %c0_151 = arith.constant 0 : index
    %c0_152 = arith.constant 0 : index
    %c0_153 = arith.constant 0 : index
    %407 = vector.load %arg30[%c0_151, %c0_152, %c0_153] : memref<2x8x128xf32, #tpu.memory_space<vmem>>, vector<2x8x128xf32>
    tpu.vector_store %arg30[%c0_151, %c0_152, %c0_153], %406 {strides = array<i32>} : memref<2x8x128xf32, #tpu.memory_space<vmem>>, vector<2x8x128xf32>,
    return
  }
}

</mosaic_0001>

<llo_original>
// kernel: tpu_custom_call.1
$region0: #{tpu_custom_call.1}
  #allocation0 [shape = 'u32[]', space=smem, size = 0x4, offset = 0x4, fixed_abs, tag = 'smem constant byte address 0x4 - core index']
  #allocation1 [shape = 'u32[72,128]{1,0:T(1,128)}', space=vmem, size = 0x9000, scoped, tag = 'internal scratch']
  %s0 = inlined_call_operand.smem [shape: u32[31], index: -1, kind: input, shape index: {}]
  %s1 = sld [smem:[%s0]]
  %s2 = scalar_lea.smem %s0, 1
  %s3 = sld [smem:[%s2]]
  %s4 = scalar_lea.smem %s0, 2
  %s5 = sld [smem:[%s4]]
  %s6 = scalar_lea.smem %s0, 3
  %s7 = sld [smem:[%s6]]
  %s8 = scalar_lea.smem %s0, 4
  %s9 = sld [smem:[%s8]]
  %s10 = scalar_lea.smem %s0, 5
  %s11 = sld [smem:[%s10]]
  %s12 = scalar_lea.smem %s0, 6
  %s13 = sld [smem:[%s12]]
  %s14 = scalar_lea.smem %s0, 7
  %s15 = sld [smem:[%s14]]
  %s16 = scalar_lea.smem %s0, 8
  %s17 = sld [smem:[%s16]]
  %s18 = scalar_lea.smem %s0, 9
  %s19 = sld [smem:[%s18]]
  %s20 = scalar_lea.smem %s0, 10
  %s21 = sld [smem:[%s20]]
  %s22 = scalar_lea.smem %s0, 11
  %s23 = sld [smem:[%s22]]
  %s24 = scalar_lea.smem %s0, 12
  %s25 = sld [smem:[%s24]]
  %s26 = scalar_lea.smem %s0, 13
  %s27 = sld [smem:[%s26]]
  %s28 = scalar_lea.smem %s0, 14
  %s29 = sld [smem:[%s28]]
  %s30 = scalar_lea.smem %s0, 15
  %s31 = sld [smem:[%s30]]
  %s32 = scalar_lea.smem %s0, 16
  %s33 = sld [smem:[%s32]]
  %s34 = scalar_lea.smem %s0, 17
  %s35 = sld [smem:[%s34]]
  %s36 = scalar_lea.smem %s0, 18
  %s37 = sld [smem:[%s36]]
  %s38 = scalar_lea.smem %s0, 19
  %s39 = sld [smem:[%s38]]
  %s40 = scalar_lea.smem %s0, 20
  %s41 = sld [smem:[%s40]]
  %s42 = scalar_lea.smem %s0, 21
  %s43 = sld [smem:[%s42]]
  %s44 = scalar_lea.smem %s0, 22
  %s45 = sld [smem:[%s44]]
  %s46 = scalar_lea.smem %s0, 23
  %s47 = sld [smem:[%s46]]
  %s48 = scalar_lea.smem %s0, 24
  %s49 = sld [smem:[%s48]]
  %s50 = scalar_lea.smem %s0, 25
  %s51 = sld [smem:[%s50]]
  %s52 = scalar_lea.smem %s0, 26
  %s53 = sld [smem:[%s52]]
  %s54 = scalar_lea.smem %s0, 27
  %s55 = sld [smem:[%s54]]
  %s56 = scalar_lea.smem %s0, 28
  %s57 = sld [smem:[%s56]]
  %s58 = scalar_lea.smem %s0, 29
  %s59 = sld [smem:[%s58]]
  %s60 = scalar_lea.smem %s0, 30
  %s61 = sld [smem:[%s60]]
  %s62 = sld [smem:[#allocation0]]
  $region130: #{tpu_custom_call.1} parent=0
    _
  %s64 = ssub.s32 1, %s62
  %s65 = scalar_select 0, %s64, %s62
  $region1: #{tpu_custom_call.1} parent=0
    #allocation2 [shape = 'u8[8192]{0}', space=vmem, size = 0x2000, scoped, tag = 'output window, operand 0, single buffered']
    #allocation3 [shape = 's32[1]{0}', space=sflag, size = 0x4, scoped, tag = 'scoped memory for tpu_custom_call.1']
    %66 = vsyncpa [#allocation3], 0
    // Predicated region
    $region2: #{tpu_custom_call.1} parent=1 // pred_check
      _
    $region3: #{tpu_custom_call.1} parent=1 // pred_check_branch
      %68 = sbr.rel (0) target = $region5
    $region4: #{tpu_custom_call.1} parent=1 // pred_region
      _
    $region5: #{tpu_custom_call.1} parent=1 // pred_fallthru
      _
    // Predicated region
    $region6: #{tpu_custom_call.1} parent=1 // pred_check
      _
    $region7: #{tpu_custom_call.1} parent=1 // pred_check_branch
      %70 = sbr.rel (0) target = $region9
    $region8: #{tpu_custom_call.1} parent=1 // pred_region
      _
    $region9: #{tpu_custom_call.1} parent=1 // pred_fallthru
      _
    // Predicated region
    $region10: #{tpu_custom_call.1} parent=1 // pred_check
      _
    $region11: #{tpu_custom_call.1} parent=1 // pred_check_branch
      %72 = sbr.rel (0) target = $region13
    $region12: #{tpu_custom_call.1} parent=1 // pred_region
      _
    $region13: #{tpu_custom_call.1} parent=1 // pred_fallthru
      _
    // Predicated region
    $region14: #{tpu_custom_call.1} parent=1 // pred_check
      _
    $region15: #{tpu_custom_call.1} parent=1 // pred_check_branch
      %74 = sbr.rel (0) target = $region17
    $region16: #{tpu_custom_call.1} parent=1 // pred_region
      _
    $region17: #{tpu_custom_call.1} parent=1 // pred_fallthru
      _
    // Predicated region
    $region18: #{tpu_custom_call.1} parent=1 // pred_check
      _
    $region19: #{tpu_custom_call.1} parent=1 // pred_check_branch
      %76 = sbr.rel (0) target = $region21
    $region20: #{tpu_custom_call.1} parent=1 // pred_region
      _
    $region21: #{tpu_custom_call.1} parent=1 // pred_fallthru
      _
    // Predicated region
    $region22: #{tpu_custom_call.1} parent=1 // pred_check
      _
    $region23: #{tpu_custom_call.1} parent=1 // pred_check_branch
      %78 = sbr.rel (0) target = $region25
    $region24: #{tpu_custom_call.1} parent=1 // pred_region
      _
    $region25: #{tpu_custom_call.1} parent=1 // pred_fallthru
      _
    // Predicated region
    $region26: #{tpu_custom_call.1} parent=1 // pred_check
      _
    $region27: #{tpu_custom_call.1} parent=1 // pred_check_branch
      %80 = sbr.rel (0) target = $region29
    $region28: #{tpu_custom_call.1} parent=1 // pred_region
      _
    $region29: #{tpu_custom_call.1} parent=1 // pred_fallthru
      _
    // Predicated region
    $region30: #{tpu_custom_call.1} parent=1 // pred_check
      _
    $region31: #{tpu_custom_call.1} parent=1 // pred_check_branch
      %82 = sbr.rel (0) target = $region33
    $region32: #{tpu_custom_call.1} parent=1 // pred_region
      _
    $region33: #{tpu_custom_call.1} parent=1 // pred_fallthru
      _
    // Predicated region
    $region34: #{tpu_custom_call.1} parent=1 // pred_check
      _
    $region35: #{tpu_custom_call.1} parent=1 // pred_check_branch
      %84 = sbr.rel (0) target = $region37
    $region36: #{tpu_custom_call.1} parent=1 // pred_region
      _
    $region37: #{tpu_custom_call.1} parent=1 // pred_fallthru
      _
    // Predicated region
    $region38: #{tpu_custom_call.1} parent=1 // pred_check
      _
    $region39: #{tpu_custom_call.1} parent=1 // pred_check_branch
      %86 = sbr.rel (0) target = $region41
    $region40: #{tpu_custom_call.1} parent=1 // pred_region
      _
    $region41: #{tpu_custom_call.1} parent=1 // pred_fallthru
      _
    // Predicated region
    $region42: #{tpu_custom_call.1} parent=1 // pred_check
      _
    $region43: #{tpu_custom_call.1} parent=1 // pred_check_branch
      %88 = sbr.rel (0) target = $region45
    $region44: #{tpu_custom_call.1} parent=1 // pred_region
      _
    $region45: #{tpu_custom_call.1} parent=1 // pred_fallthru
      _
    // Predicated region
    $region46: #{tpu_custom_call.1} parent=1 // pred_check
      _
    $region47: #{tpu_custom_call.1} parent=1 // pred_check_branch
      %90 = sbr.rel (0) target = $region49
    $region48: #{tpu_custom_call.1} parent=1 // pred_region
      _
    $region49: #{tpu_custom_call.1} parent=1 // pred_fallthru
      _
    // Predicated region
    $region50: #{tpu_custom_call.1} parent=1 // pred_check
      _
    $region51: #{tpu_custom_call.1} parent=1 // pred_check_branch
      %92 = sbr.rel (0) target = $region53
    $region52: #{tpu_custom_call.1} parent=1 // pred_region
      _
    $region53: #{tpu_custom_call.1} parent=1 // pred_fallthru
      _
    // Predicated region
    $region54: #{tpu_custom_call.1} parent=1 // pred_check
      _
    $region55: #{tpu_custom_call.1} parent=1 // pred_check_branch
      %94 = sbr.rel (0) target = $region57
    $region56: #{tpu_custom_call.1} parent=1 // pred_region
      _
    $region57: #{tpu_custom_call.1} parent=1 // pred_fallthru
      _
    // Predicated region
    $region58: #{tpu_custom_call.1} parent=1 // pred_check
      _
    $region59: #{tpu_custom_call.1} parent=1 // pred_check_branch
      %96 = sbr.rel (0) target = $region61
    $region60: #{tpu_custom_call.1} parent=1 // pred_region
      _
    $region61: #{tpu_custom_call.1} parent=1 // pred_fallthru
      _
    // Predicated region
    $region62: #{tpu_custom_call.1} parent=1 // pred_check
      _
    $region63: #{tpu_custom_call.1} parent=1 // pred_check_branch
      %98 = sbr.rel (0) target = $region65
    $region64: #{tpu_custom_call.1} parent=1 // pred_region
      _
    $region65: #{tpu_custom_call.1} parent=1 // pred_fallthru
      _
    // Predicated region
    $region66: #{tpu_custom_call.1} parent=1 // pred_check
      _
    $region67: #{tpu_custom_call.1} parent=1 // pred_check_branch
      %100 = sbr.rel (0) target = $region69
    $region68: #{tpu_custom_call.1} parent=1 // pred_region
      _
    $region69: #{tpu_custom_call.1} parent=1 // pred_fallthru
      _
    // Predicated region
    $region70: #{tpu_custom_call.1} parent=1 // pred_check
      _
    $region71: #{tpu_custom_call.1} parent=1 // pred_check_branch
      %102 = sbr.rel (0) target = $region73
    $region72: #{tpu_custom_call.1} parent=1 // pred_region
      _
    $region73: #{tpu_custom_call.1} parent=1 // pred_fallthru
      _
    // Predicated region
    $region74: #{tpu_custom_call.1} parent=1 // pred_check
      _
    $region75: #{tpu_custom_call.1} parent=1 // pred_check_branch
      %104 = sbr.rel (0) target = $region77
    $region76: #{tpu_custom_call.1} parent=1 // pred_region
      _
    $region77: #{tpu_custom_call.1} parent=1 // pred_fallthru
      _
    // Predicated region
    $region78: #{tpu_custom_call.1} parent=1 // pred_check
      _
    $region79: #{tpu_custom_call.1} parent=1 // pred_check_branch
      %106 = sbr.rel (0) target = $region81
    $region80: #{tpu_custom_call.1} parent=1 // pred_region
      _
    $region81: #{tpu_custom_call.1} parent=1 // pred_fallthru
      _
    // Predicated region
    $region82: #{tpu_custom_call.1} parent=1 // pred_check
      _
    $region83: #{tpu_custom_call.1} parent=1 // pred_check_branch
      %108 = sbr.rel (0) target = $region85
    $region84: #{tpu_custom_call.1} parent=1 // pred_region
      _
    $region85: #{tpu_custom_call.1} parent=1 // pred_fallthru
      _
    // Predicated region
    $region86: #{tpu_custom_call.1} parent=1 // pred_check
      _
    $region87: #{tpu_custom_call.1} parent=1 // pred_check_branch
      %110 = sbr.rel (0) target = $region89
    $region88: #{tpu_custom_call.1} parent=1 // pred_region
      _
    $region89: #{tpu_custom_call.1} parent=1 // pred_fallthru
      _
    // Predicated region
    $region90: #{tpu_custom_call.1} parent=1 // pred_check
      _
    $region91: #{tpu_custom_call.1} parent=1 // pred_check_branch
      %112 = sbr.rel (0) target = $region93
    $region92: #{tpu_custom_call.1} parent=1 // pred_region
      _
    $region93: #{tpu_custom_call.1} parent=1 // pred_fallthru
      _
    // Predicated region
    $region94: #{tpu_custom_call.1} parent=1 // pred_check
      _
    $region95: #{tpu_custom_call.1} parent=1 // pred_check_branch
      %114 = sbr.rel (0) target = $region97
    $region96: #{tpu_custom_call.1} parent=1 // pred_region
      _
    $region97: #{tpu_custom_call.1} parent=1 // pred_fallthru
      _
    // Predicated region
    $region98: #{tpu_custom_call.1} parent=1 // pred_check
      _
    $region99: #{tpu_custom_call.1} parent=1 // pred_check_branch
      %116 = sbr.rel (0) target = $region101
    $region100: #{tpu_custom_call.1} parent=1 // pred_region
      _
    $region101: #{tpu_custom_call.1} parent=1 // pred_fallthru
      _
    // Predicated region
    $region102: #{tpu_custom_call.1} parent=1 // pred_check
      _
    $region103: #{tpu_custom_call.1} parent=1 // pred_check_branch
      %118 = sbr.rel (0) target = $region105
    $region104: #{tpu_custom_call.1} parent=1 // pred_region
      _
    $region105: #{tpu_custom_call.1} parent=1 // pred_fallthru
      _
    // Predicated region
    $region106: #{tpu_custom_call.1} parent=1 // pred_check
      _
    $region107: #{tpu_custom_call.1} parent=1 // pred_check_branch
      %120 = sbr.rel (0) target = $region109
    $region108: #{tpu_custom_call.1} parent=1 // pred_region
      _
    $region109: #{tpu_custom_call.1} parent=1 // pred_fallthru
      _
    // Predicated region
    $region110: #{tpu_custom_call.1} parent=1 // pred_check
      _
    $region111: #{tpu_custom_call.1} parent=1 // pred_check_branch
      %122 = sbr.rel (0) target = $region113
    $region112: #{tpu_custom_call.1} parent=1 // pred_region
      _
    $region113: #{tpu_custom_call.1} parent=1 // pred_fallthru
      _
    // Predicated region
    $region114: #{tpu_custom_call.1} parent=1 // pred_check
      _
    $region115: #{tpu_custom_call.1} parent=1 // pred_check_branch
      %124 = sbr.rel (0) target = $region117
    $region116: #{tpu_custom_call.1} parent=1 // pred_region
      _
    $region117: #{tpu_custom_call.1} parent=1 // pred_fallthru
      _
    // Predicated region
    $region118: #{tpu_custom_call.1} parent=1 // pred_check
      _
    $region119: #{tpu_custom_call.1} parent=1 // pred_check_branch
      %126 = sbr.rel (0) target = $region121
    $region120: #{tpu_custom_call.1} parent=1 // pred_region
      _
    $region121: #{tpu_custom_call.1} parent=1 // pred_fallthru
      _
    %v127 = vld [vmem:[%s1] sm:$0xff]
    %v128 = vld [vmem:[%s1 + $0x8] sm:$0xff]
    %v129 = vlaneseq
    %v130 = vand.u32 %v129, 127
    %131 = vset.pattern.permute.xlu0 0
    %132 = vperm.xlu0 %131, %v127
    %v133 = vpop.permute.xlu0 %132
    %134 = vset.pattern.permute.xlu0 0
    %135 = vperm.xlu0 %134, %v128
    %v136 = vpop.permute.xlu0 %135
    %vm137 = vcmp.eq.s32.totalorder %v130, %v133
    %vm138 = vcmp.eq.s32.totalorder %v130, %v136
    %v139 = vsel %vm137, 1, 0
    %v140 = vsel %vm138, 1, 0
    %v141 = vcvt.s32.f32 %v139
    %v142 = vcvt.s32.f32 %v140
    %v143 = vld [vmem:[%s3] sm:$0xff]
    %v144 = vld [vmem:[%s3 + $0x8] sm:$0xff]
    %v145 = vld [vmem:[%s3 + $0x10] sm:$0xff]
    %v146 = vld [vmem:[%s3 + $0x18] sm:$0xff]
    %v147 = vld [vmem:[%s3 + $0x20] sm:$0xff]
    %v148 = vld [vmem:[%s3 + $0x28] sm:$0xff]
    %v149 = vld [vmem:[%s3 + $0x30] sm:$0xff]
    %v150 = vld [vmem:[%s3 + $0x38] sm:$0xff]
    %v151 = vld [vmem:[%s3 + $0x40] sm:$0xff]
    %v152 = vld [vmem:[%s3 + $0x48] sm:$0xff]
    %v153 = vld [vmem:[%s3 + $0x50] sm:$0xff]
    %v154 = vld [vmem:[%s3 + $0x58] sm:$0xff]
    %v155 = vld [vmem:[%s3 + $0x60] sm:$0xff]
    %v156 = vld [vmem:[%s3 + $0x68] sm:$0xff]
    %v157 = vld [vmem:[%s3 + $0x70] sm:$0xff]
    %v158 = vld [vmem:[%s3 + $0x78] sm:$0xff]
    %v159 = vld [vmem:[%s5] sm:$0xff]
    %160 = vmatpush.msra.mxu0 %v158
    %161 = vmatpush.msra.mxu0 %v157
    %162 = vmatpush.msra.mxu0 %v156
    %163 = vmatpush.msra.mxu0 %v155
    %164 = vmatpush.msra.mxu0 %v154
    %165 = vmatpush.msra.mxu0 %v153
    %166 = vmatpush.msra.mxu0 %v152
    %167 = vmatpush.msra.mxu0 %v151
    %168 = vmatpush.msra.mxu0 %v150
    %169 = vmatpush.msra.mxu0 %v149
    %170 = vmatpush.msra.mxu0 %v148
    %171 = vmatpush.msra.mxu0 %v147
    %172 = vmatpush.msra.mxu0 %v146
    %173 = vmatpush.msra.mxu0 %v145
    %174 = vmatpush.msra.mxu0 %v144
    %175 = vmatpush.msra.mxu0 %v143
    %176 = vmatmul.f32.gmra.mxu0 %v141
    %v177 = vpop.f32.mrf.mxu0
    %v178 = vadd.f32 %v159, %v177
    %179 = vmatmul.f32.gmra.mxu0 %v142
    %v180 = vpop.f32.mrf.mxu0
    %v181 = vadd.f32 %v159, %v180
    %182 = vdwg.mxu0
    %v183 = vlaneseq
    %v184 = vshrl.u32 %v183, 7
    %vm185 = vcmp.gt.s32.totalorder %v130, %v184
    %v186 = vsel %vm185, -1e+30, 0.0
    %v187 = vld [vmem:[%s7] sm:$0x1]
    %v188 = vld [vmem:[%s9] sm:$0x1]
    %vm189 = vcmask 261120
    %v190 = vsel %vm189, %v178, 0.0
    %191 = vadd.xlane.f32.xlu0 %v190
    %v192 = vpop.xlane.xlu0 %191
    %v193 = vsel %vm189, %v181, 0.0
    %194 = vadd.xlane.f32.xlu0 %v193
    %v195 = vpop.xlane.xlu0 %194
    %v196 = vrcp.pop 32.0
    %v197 = vmul.f32 32.0, %v196
    %v198 = vsub.f32 1.0, %v197
    %v199 = vmul.f32 %v196, %v198
    %v200 = vadd.f32 %v196, %v199
    %vm201 = vweird.f32 %v196
    %v202 = vsel %vm201, %v196, %v200
    %v203 = vmul.f32 %v192, %v202
    %v204 = vmul.f32 %v195, %v202
    %v205 = vsub.f32 %v178, %v203
    %v206 = vsub.f32 %v181, %v204
    %v207 = vmul.f32 %v205, %v205
    %v208 = vmul.f32 %v206, %v206
    %v209 = vsel %vm189, %v207, 0.0
    %210 = vadd.xlane.f32.xlu0 %v209
    %v211 = vpop.xlane.xlu0 %210
    %v212 = vsel %vm189, %v208, 0.0
    %213 = vadd.xlane.f32.xlu0 %v212
    %v214 = vpop.xlane.xlu0 %213
    %v215 = vmul.f32 %v211, %v202
    %v216 = vmul.f32 %v214, %v202
    %v217 = vadd.f32 %v215, 1e-05
    %v218 = vadd.f32 %v216, 1e-05
    %v219 = vrsqrt.pop %v217
    %v220 = vmul.f32 %v219, %v217
    %v221 = vmul.f32 %v220, %v219
    %v222 = vmul.f32 0.5, %v221
    %v223 = vsub.f32 1.5, %v222
    %v224 = vmul.f32 %v219, %v223
    %vm225 = vweird.f32 %v217
    %vm226 = vweird.f32 %v219
    %vm227 = vmor %vm225, %vm226
    %v228 = vsel %vm227, %v219, %v224
    %v229 = vrsqrt.pop %v218
    %v230 = vmul.f32 %v229, %v218
    %v231 = vmul.f32 %v230, %v229
    %v232 = vmul.f32 0.5, %v231
    %v233 = vsub.f32 1.5, %v232
    %v234 = vmul.f32 %v229, %v233
    %vm235 = vweird.f32 %v218
    %vm236 = vweird.f32 %v229
    %vm237 = vmor %vm235, %vm236
    %v238 = vsel %vm237, %v229, %v234
    %v239 = vmul.f32 %v205, %v228
    %v240 = vmul.f32 %v206, %v238
    %v242 = vperm.slane %v187, 0
    %v244 = vmul.f32 %v239, %v242
    %v245 = vmul.f32 %v240, %v242
    %v247 = vperm.slane %v188, 0
    %v249 = vadd.f32 %v244, %v247
    %v250 = vadd.f32 %v245, %v247
    %v251 = vld [vmem:[%s11] sm:$0xff]
    %v252 = vld [vmem:[%s11 + $0x8] sm:$0xff]
    %v253 = vld [vmem:[%s11 + $0x10] sm:$0xff]
    %v254 = vld [vmem:[%s11 + $0x18] sm:$0xff]
    %v255 = vld [vmem:[%s13] sm:$0x1]
    %v257 = vperm.slane %v255, 0
    %v260 = vsel %vm189, %v249, 0
    %v263 = vsel %vm189, %v250, 0
    %265 = vmatpush.msra.mxu0 0.0
    %266 = vmatpush.msra.mxu0 0.0
    %267 = vmatpush.msra.mxu0 0.0
    %268 = vmatpush.msra.mxu0 0.0
    %269 = vmatpush.msra.mxu0 0.0
    %270 = vmatpush.msra.mxu0 0.0
    %271 = vmatpush.msra.mxu0 0.0
    %272 = vmatpush.msra.mxu0 0.0
    %273 = vmatpush.msra.mxu0 0.0
    %274 = vmatpush.msra.mxu0 0.0
    %275 = vmatpush.msra.mxu0 0.0
    %276 = vmatpush.msra.mxu0 0.0
    %277 = vmatpush.msra.mxu0 %v254
    %278 = vmatpush.msra.mxu0 %v253
    %279 = vmatpush.msra.mxu0 %v252
    %280 = vmatpush.msra.mxu0 %v251
    %281 = vmatmul.f32.gmra.mxu0 %v260
    %v282 = vpop.f32.mrf.mxu0
    %v283 = vadd.f32 %v257, %v282
    %284 = vmatmul.f32.gmra.mxu0 %v263
    %v285 = vpop.f32.mrf.mxu0
    %v286 = vadd.f32 %v257, %v285
    %287 = vdwg.mxu0
    %v288 = vld [vmem:[%s15] sm:$0xff]
    %v289 = vld [vmem:[%s15 + $0x8] sm:$0xff]
    %v290 = vld [vmem:[%s15 + $0x10] sm:$0xff]
    %v291 = vld [vmem:[%s15 + $0x18] sm:$0xff]
    %293 = vrot.lane.b32.xlu0 %v283, 96
    %v294 = vpop.permute.xlu0 %293
    %vm295 = vcmask 64512
    %v296 = vsel %vm295, %v283, 0
    %v298 = vsel %vm295, %v294, 0
    %300 = vmatpush.xpose.msra.mxu0 0.0
    %301 = vmatpush.xpose.msra.mxu0 0.0
    %302 = vmatpush.xpose.msra.mxu0 0.0
    %303 = vmatpush.xpose.msra.mxu0 0.0
    %304 = vmatpush.xpose.msra.mxu0 0.0
    %305 = vmatpush.xpose.msra.mxu0 0.0
    %306 = vmatpush.xpose.msra.mxu0 0.0
    %307 = vmatpush.xpose.msra.mxu0 0.0
    %308 = vmatpush.xpose.msra.mxu0 0.0
    %309 = vmatpush.xpose.msra.mxu0 0.0
    %310 = vmatpush.xpose.msra.mxu0 0.0
    %311 = vmatpush.xpose.msra.mxu0 0.0
    %312 = vmatpush.xpose.msra.mxu0 0.0
    %313 = vmatpush.xpose.msra.mxu0 0.0
    %314 = vmatpush.xpose.msra.mxu0 0.0
    %315 = vmatpush.xpose.msra.mxu0 %v298
    %316 = vmatmul.f32.gmra.mxu0 %v296
    %v317 = vpop.f32.mrf.mxu0
    %v318 = vadd.f32 0.0, %v317
    %319 = vdwg.mxu0
    %321 = vrot.lane.b32.xlu0 %v286, 96
    %v322 = vpop.permute.xlu0 %321
    %v323 = vsel %vm295, %v286, 0
    %v325 = vsel %vm295, %v322, 0
    %327 = vmatpush.xpose.msra.mxu0 0.0
    %328 = vmatpush.xpose.msra.mxu0 0.0
    %329 = vmatpush.xpose.msra.mxu0 0.0
    %330 = vmatpush.xpose.msra.mxu0 0.0
    %331 = vmatpush.xpose.msra.mxu0 0.0
    %332 = vmatpush.xpose.msra.mxu0 0.0
    %333 = vmatpush.xpose.msra.mxu0 0.0
    %334 = vmatpush.xpose.msra.mxu0 0.0
    %335 = vmatpush.xpose.msra.mxu0 0.0
    %336 = vmatpush.xpose.msra.mxu0 0.0
    %337 = vmatpush.xpose.msra.mxu0 0.0
    %338 = vmatpush.xpose.msra.mxu0 0.0
    %339 = vmatpush.xpose.msra.mxu0 0.0
    %340 = vmatpush.xpose.msra.mxu0 0.0
    %341 = vmatpush.xpose.msra.mxu0 0.0
    %342 = vmatpush.xpose.msra.mxu0 %v325
    %343 = vmatmul.f32.gmra.mxu0 %v323
    %v344 = vpop.f32.mrf.mxu0
    %v345 = vadd.f32 0.0, %v344
    %346 = vdwg.mxu0
    %v347 = vmul.f32 %v318, 0.35355338
    %v348 = vmul.f32 %v345, 0.35355338
    %v349 = vadd.f32 %v347, %v186
    %v350 = vadd.f32 %v348, %v186
    %v351 = vsel %vm295, %v349, -inf
    %352 = vmax.xlane.f32.xlu0 %v351
    %v353 = vpop.xlane.xlu0 %352
    %v354 = vsel %vm295, %v350, -inf
    %355 = vmax.xlane.f32.xlu0 %v354
    %v356 = vpop.xlane.xlu0 %355
    %v357 = vsub.f32 %v349, %v353
    %v358 = vsub.f32 %v350, %v356
    %v359 = vmul.f32 %v357, 1.442695
    %v360 = vpow.pop %v359
    %v361 = vmul.f32 %v358, 1.442695
    %v362 = vpow.pop %v361
    %v363 = vsel %vm295, %v360, 0.0
    %364 = vadd.xlane.f32.xlu0 %v363
    %v365 = vpop.xlane.xlu0 %364
    %v366 = vsel %vm295, %v362, 0.0
    %367 = vadd.xlane.f32.xlu0 %v366
    %v368 = vpop.xlane.xlu0 %367
    %v369 = vrcp.pop %v365
    %v370 = vrcp.pop %v368
    %v371 = vmul.f32 %v360, %v369
    %v372 = vmul.f32 %v362, %v370
    %373 = vrot.lane.b32.xlu0 %v283, 64
    %v374 = vpop.permute.xlu0 %373
    %v377 = vsel %vm295, %v371, 0
    %379 = vmatpush.msra.mxu0 0.0
    %380 = vmatpush.msra.mxu0 0.0
    %381 = vmatpush.msra.mxu0 0.0
    %382 = vmatpush.msra.mxu0 0.0
    %383 = vmatpush.msra.mxu0 0.0
    %384 = vmatpush.msra.mxu0 0.0
    %385 = vmatpush.msra.mxu0 0.0
    %386 = vmatpush.msra.mxu0 0.0
    %387 = vmatpush.msra.mxu0 0.0
    %388 = vmatpush.msra.mxu0 0.0
    %389 = vmatpush.msra.mxu0 0.0
    %390 = vmatpush.msra.mxu0 0.0
    %391 = vmatpush.msra.mxu0 0.0
    %392 = vmatpush.msra.mxu0 0.0
    %393 = vmatpush.msra.mxu0 0.0
    %394 = vmatpush.msra.mxu0 %v374
    %395 = vmatmul.f32.gmra.mxu0 %v377
    %v396 = vpop.f32.mrf.mxu0
    %v397 = vadd.f32 0.0, %v396
    %398 = vdwg.mxu0
    %399 = vrot.lane.b32.xlu0 %v286, 64
    %v400 = vpop.permute.xlu0 %399
    %v403 = vsel %vm295, %v372, 0
    %405 = vmatpush.msra.mxu0 0.0
    %406 = vmatpush.msra.mxu0 0.0
    %407 = vmatpush.msra.mxu0 0.0
    %408 = vmatpush.msra.mxu0 0.0
    %409 = vmatpush.msra.mxu0 0.0
    %410 = vmatpush.msra.mxu0 0.0
    %411 = vmatpush.msra.mxu0 0.0
    %412 = vmatpush.msra.mxu0 0.0
    %413 = vmatpush.msra.mxu0 0.0
    %414 = vmatpush.msra.mxu0 0.0
    %415 = vmatpush.msra.mxu0 0.0
    %416 = vmatpush.msra.mxu0 0.0
    %417 = vmatpush.msra.mxu0 0.0
    %418 = vmatpush.msra.mxu0 0.0
    %419 = vmatpush.msra.mxu0 0.0
    %420 = vmatpush.msra.mxu0 %v400
    %421 = vmatmul.f32.gmra.mxu0 %v403
    %v422 = vpop.f32.mrf.mxu0
    %v423 = vadd.f32 0.0, %v422
    %424 = vdwg.mxu0
    %425 = vrot.lane.b32.xlu0 %v283, 120
    %v426 = vpop.permute.xlu0 %425
    %427 = vrot.lane.b32.xlu0 %v283, 88
    %v428 = vpop.permute.xlu0 %427
    %v429 = vsel %vm295, %v426, 0
    %v431 = vsel %vm295, %v428, 0
    %433 = vmatpush.xpose.msra.mxu0 0.0
    %434 = vmatpush.xpose.msra.mxu0 0.0
    %435 = vmatpush.xpose.msra.mxu0 0.0
    %436 = vmatpush.xpose.msra.mxu0 0.0
    %437 = vmatpush.xpose.msra.mxu0 0.0
    %438 = vmatpush.xpose.msra.mxu0 0.0
    %439 = vmatpush.xpose.msra.mxu0 0.0
    %440 = vmatpush.xpose.msra.mxu0 0.0
    %441 = vmatpush.xpose.msra.mxu0 0.0
    %442 = vmatpush.xpose.msra.mxu0 0.0
    %443 = vmatpush.xpose.msra.mxu0 0.0
    %444 = vmatpush.xpose.msra.mxu0 0.0
    %445 = vmatpush.xpose.msra.mxu0 0.0
    %446 = vmatpush.xpose.msra.mxu0 0.0
    %447 = vmatpush.xpose.msra.mxu0 0.0
    %448 = vmatpush.xpose.msra.mxu0 %v431
    %449 = vmatmul.f32.gmra.mxu0 %v429
    %v450 = vpop.f32.mrf.mxu0
    %v451 = vadd.f32 0.0, %v450
    %452 = vdwg.mxu0
    %453 = vrot.lane.b32.xlu0 %v286, 120
    %v454 = vpop.permute.xlu0 %453
    %455 = vrot.lane.b32.xlu0 %v286, 88
    %v456 = vpop.permute.xlu0 %455
    %v457 = vsel %vm295, %v454, 0
    %v459 = vsel %vm295, %v456, 0
    %461 = vmatpush.xpose.msra.mxu0 0.0
    %462 = vmatpush.xpose.msra.mxu0 0.0
    %463 = vmatpush.xpose.msra.mxu0 0.0
    %464 = vmatpush.xpose.msra.mxu0 0.0
    %465 = vmatpush.xpose.msra.mxu0 0.0
    %466 = vmatpush.xpose.msra.mxu0 0.0
    %467 = vmatpush.xpose.msra.mxu0 0.0
    %468 = vmatpush.xpose.msra.mxu0 0.0
    %469 = vmatpush.xpose.msra.mxu0 0.0
    %470 = vmatpush.xpose.msra.mxu0 0.0
    %471 = vmatpush.xpose.msra.mxu0 0.0
    %472 = vmatpush.xpose.msra.mxu0 0.0
    %473 = vmatpush.xpose.msra.mxu0 0.0
    %474 = vmatpush.xpose.msra.mxu0 0.0
    %475 = vmatpush.xpose.msra.mxu0 0.0
    %476 = vmatpush.xpose.msra.mxu0 %v459
    %477 = vmatmul.f32.gmra.mxu0 %v457
    %v478 = vpop.f32.mrf.mxu0
    %v479 = vadd.f32 0.0, %v478
    %480 = vdwg.mxu0
    %v481 = vmul.f32 %v451, 0.35355338
    %v482 = vmul.f32 %v479, 0.35355338
    %v483 = vadd.f32 %v481, %v186
    %v484 = vadd.f32 %v482, %v186
    %v485 = vsel %vm295, %v483, -inf
    %486 = vmax.xlane.f32.xlu0 %v485
    %v487 = vpop.xlane.xlu0 %486
    %v488 = vsel %vm295, %v484, -inf
    %489 = vmax.xlane.f32.xlu0 %v488
    %v490 = vpop.xlane.xlu0 %489
    %v491 = vsub.f32 %v483, %v487
    %v492 = vsub.f32 %v484, %v490
    %v493 = vmul.f32 %v491, 1.442695
    %v494 = vpow.pop %v493
    %v495 = vmul.f32 %v492, 1.442695
    %v496 = vpow.pop %v495
    %v497 = vsel %vm295, %v494, 0.0
    %498 = vadd.xlane.f32.xlu0 %v497
    %v499 = vpop.xlane.xlu0 %498
    %v500 = vsel %vm295, %v496, 0.0
    %501 = vadd.xlane.f32.xlu0 %v500
    %v502 = vpop.xlane.xlu0 %501
    %v503 = vrcp.pop %v499
    %v504 = vrcp.pop %v502
    %v505 = vmul.f32 %v494, %v503
    %v506 = vmul.f32 %v496, %v504
    %507 = vrot.lane.b32.xlu0 %v283, 56
    %v508 = vpop.permute.xlu0 %507
    %v511 = vsel %vm295, %v505, 0
    %513 = vmatpush.msra.mxu0 0.0
    %514 = vmatpush.msra.mxu0 0.0
    %515 = vmatpush.msra.mxu0 0.0
    %516 = vmatpush.msra.mxu0 0.0
    %517 = vmatpush.msra.mxu0 0.0
    %518 = vmatpush.msra.mxu0 0.0
    %519 = vmatpush.msra.mxu0 0.0
    %520 = vmatpush.msra.mxu0 0.0
    %521 = vmatpush.msra.mxu0 0.0
    %522 = vmatpush.msra.mxu0 0.0
    %523 = vmatpush.msra.mxu0 0.0
    %524 = vmatpush.msra.mxu0 0.0
    %525 = vmatpush.msra.mxu0 0.0
    %526 = vmatpush.msra.mxu0 0.0
    %527 = vmatpush.msra.mxu0 0.0
    %528 = vmatpush.msra.mxu0 %v508
    %529 = vmatmul.f32.gmra.mxu0 %v511
    %v530 = vpop.f32.mrf.mxu0
    %v531 = vadd.f32 0.0, %v530
    %532 = vdwg.mxu0
    %533 = vrot.lane.b32.xlu0 %v286, 56
    %v534 = vpop.permute.xlu0 %533
    %v537 = vsel %vm295, %v506, 0
    %539 = vmatpush.msra.mxu0 0.0
    %540 = vmatpush.msra.mxu0 0.0
    %541 = vmatpush.msra.mxu0 0.0
    %542 = vmatpush.msra.mxu0 0.0
    %543 = vmatpush.msra.mxu0 0.0
    %544 = vmatpush.msra.mxu0 0.0
    %545 = vmatpush.msra.mxu0 0.0
    %546 = vmatpush.msra.mxu0 0.0
    %547 = vmatpush.msra.mxu0 0.0
    %548 = vmatpush.msra.mxu0 0.0
    %549 = vmatpush.msra.mxu0 0.0
    %550 = vmatpush.msra.mxu0 0.0
    %551 = vmatpush.msra.mxu0 0.0
    %552 = vmatpush.msra.mxu0 0.0
    %553 = vmatpush.msra.mxu0 0.0
    %554 = vmatpush.msra.mxu0 %v534
    %555 = vmatmul.f32.gmra.mxu0 %v537
    %v556 = vpop.f32.mrf.mxu0
    %v557 = vadd.f32 0.0, %v556
    %558 = vdwg.mxu0
    %v560 = vsel %vm295, %v531, 0
    %v563 = vsel %vm295, %v557, 0
    %565 = vmatpush.msra.mxu0 0.0
    %566 = vmatpush.msra.mxu0 0.0
    %567 = vmatpush.msra.mxu0 0.0
    %568 = vmatpush.msra.mxu0 0.0
    %569 = vmatpush.msra.mxu0 0.0
    %570 = vmatpush.msra.mxu0 0.0
    %571 = vmatpush.msra.mxu0 0.0
    %572 = vmatpush.msra.mxu0 0.0
    %573 = vmatpush.msra.mxu0 0.0
    %574 = vmatpush.msra.mxu0 0.0
    %575 = vmatpush.msra.mxu0 0.0
    %576 = vmatpush.msra.mxu0 0.0
    %577 = vmatpush.msra.mxu0 0.0
    %578 = vmatpush.msra.mxu0 0.0
    %579 = vmatpush.msra.mxu0 0.0
    %580 = vmatpush.msra.mxu0 %v289
    %581 = vmatmul.f32.gmra.mxu0 %v560
    %v582 = vpop.f32.mrf.mxu0
    %v583 = vadd.f32 0.0, %v582
    %584 = vmatmul.f32.gmra.mxu0 %v563
    %v585 = vpop.f32.mrf.mxu0
    %v586 = vadd.f32 0.0, %v585
    %587 = vdwg.mxu0
    %v589 = vsel %vm295, %v397, 0
    %v592 = vsel %vm295, %v423, 0
    %594 = vmatpush.msra.mxu0 0.0
    %595 = vmatpush.msra.mxu0 0.0
    %596 = vmatpush.msra.mxu0 0.0
    %597 = vmatpush.msra.mxu0 0.0
    %598 = vmatpush.msra.mxu0 0.0
    %599 = vmatpush.msra.mxu0 0.0
    %600 = vmatpush.msra.mxu0 0.0
    %601 = vmatpush.msra.mxu0 0.0
    %602 = vmatpush.msra.mxu0 0.0
    %603 = vmatpush.msra.mxu0 0.0
    %604 = vmatpush.msra.mxu0 0.0
    %605 = vmatpush.msra.mxu0 0.0
    %606 = vmatpush.msra.mxu0 0.0
    %607 = vmatpush.msra.mxu0 0.0
    %608 = vmatpush.msra.mxu0 0.0
    %609 = vmatpush.msra.mxu0 %v288
    %610 = vmatmul.f32.gmra.mxu0 %v589
    %v611 = vpop.f32.mrf.mxu0
    %v612 = vadd.f32 %v583, %v611
    %613 = vmatmul.f32.gmra.mxu0 %v592
    %v614 = vpop.f32.mrf.mxu0
    %v615 = vadd.f32 %v586, %v614
    %616 = vdwg.mxu0
    %617 = vrot.lane.b32.xlu0 %v283, 112
    %v618 = vpop.permute.xlu0 %617
    %619 = vrot.lane.b32.xlu0 %v283, 80
    %v620 = vpop.permute.xlu0 %619
    %v621 = vsel %vm295, %v618, 0
    %v623 = vsel %vm295, %v620, 0
    %625 = vmatpush.xpose.msra.mxu0 0.0
    %626 = vmatpush.xpose.msra.mxu0 0.0
    %627 = vmatpush.xpose.msra.mxu0 0.0
    %628 = vmatpush.xpose.msra.mxu0 0.0
    %629 = vmatpush.xpose.msra.mxu0 0.0
    %630 = vmatpush.xpose.msra.mxu0 0.0
    %631 = vmatpush.xpose.msra.mxu0 0.0
    %632 = vmatpush.xpose.msra.mxu0 0.0
    %633 = vmatpush.xpose.msra.mxu0 0.0
    %634 = vmatpush.xpose.msra.mxu0 0.0
    %635 = vmatpush.xpose.msra.mxu0 0.0
    %636 = vmatpush.xpose.msra.mxu0 0.0
    %637 = vmatpush.xpose.msra.mxu0 0.0
    %638 = vmatpush.xpose.msra.mxu0 0.0
    %639 = vmatpush.xpose.msra.mxu0 0.0
    %640 = vmatpush.xpose.msra.mxu0 %v623
    %641 = vmatmul.f32.gmra.mxu0 %v621
    %v642 = vpop.f32.mrf.mxu0
    %v643 = vadd.f32 0.0, %v642
    %644 = vdwg.mxu0
    %645 = vrot.lane.b32.xlu0 %v286, 112
    %v646 = vpop.permute.xlu0 %645
    %647 = vrot.lane.b32.xlu0 %v286, 80
    %v648 = vpop.permute.xlu0 %647
    %v649 = vsel %vm295, %v646, 0
    %v651 = vsel %vm295, %v648, 0
    %653 = vmatpush.xpose.msra.mxu0 0.0
    %654 = vmatpush.xpose.msra.mxu0 0.0
    %655 = vmatpush.xpose.msra.mxu0 0.0
    %656 = vmatpush.xpose.msra.mxu0 0.0
    %657 = vmatpush.xpose.msra.mxu0 0.0
    %658 = vmatpush.xpose.msra.mxu0 0.0
    %659 = vmatpush.xpose.msra.mxu0 0.0
    %660 = vmatpush.xpose.msra.mxu0 0.0
    %661 = vmatpush.xpose.msra.mxu0 0.0
    %662 = vmatpush.xpose.msra.mxu0 0.0
    %663 = vmatpush.xpose.msra.mxu0 0.0
    %664 = vmatpush.xpose.msra.mxu0 0.0
    %665 = vmatpush.xpose.msra.mxu0 0.0
    %666 = vmatpush.xpose.msra.mxu0 0.0
    %667 = vmatpush.xpose.msra.mxu0 0.0
    %668 = vmatpush.xpose.msra.mxu0 %v651
    %669 = vmatmul.f32.gmra.mxu0 %v649
    %v670 = vpop.f32.mrf.mxu0
    %v671 = vadd.f32 0.0, %v670
    %672 = vdwg.mxu0
    %v673 = vmul.f32 %v643, 0.35355338
    %v674 = vmul.f32 %v671, 0.35355338
    %v675 = vadd.f32 %v673, %v186
    %v676 = vadd.f32 %v674, %v186
    %v677 = vsel %vm295, %v675, -inf
    %678 = vmax.xlane.f32.xlu0 %v677
    %v679 = vpop.xlane.xlu0 %678
    %v680 = vsel %vm295, %v676, -inf
    %681 = vmax.xlane.f32.xlu0 %v680
    %v682 = vpop.xlane.xlu0 %681
    %v683 = vsub.f32 %v675, %v679
    %v684 = vsub.f32 %v676, %v682
    %v685 = vmul.f32 %v683, 1.442695
    %v686 = vpow.pop %v685
    %v687 = vmul.f32 %v684, 1.442695
    %v688 = vpow.pop %v687
    %v689 = vsel %vm295, %v686, 0.0
    %690 = vadd.xlane.f32.xlu0 %v689
    %v691 = vpop.xlane.xlu0 %690
    %v692 = vsel %vm295, %v688, 0.0
    %693 = vadd.xlane.f32.xlu0 %v692
    %v694 = vpop.xlane.xlu0 %693
    %v695 = vrcp.pop %v691
    %v696 = vrcp.pop %v694
    %v697 = vmul.f32 %v686, %v695
    %v698 = vmul.f32 %v688, %v696
    %699 = vrot.lane.b32.xlu0 %v283, 48
    %v700 = vpop.permute.xlu0 %699
    %v703 = vsel %vm295, %v697, 0
    %705 = vmatpush.msra.mxu0 0.0
    %706 = vmatpush.msra.mxu0 0.0
    %707 = vmatpush.msra.mxu0 0.0
    %708 = vmatpush.msra.mxu0 0.0
    %709 = vmatpush.msra.mxu0 0.0
    %710 = vmatpush.msra.mxu0 0.0
    %711 = vmatpush.msra.mxu0 0.0
    %712 = vmatpush.msra.mxu0 0.0
    %713 = vmatpush.msra.mxu0 0.0
    %714 = vmatpush.msra.mxu0 0.0
    %715 = vmatpush.msra.mxu0 0.0
    %716 = vmatpush.msra.mxu0 0.0
    %717 = vmatpush.msra.mxu0 0.0
    %718 = vmatpush.msra.mxu0 0.0
    %719 = vmatpush.msra.mxu0 0.0
    %720 = vmatpush.msra.mxu0 %v700
    %721 = vmatmul.f32.gmra.mxu0 %v703
    %v722 = vpop.f32.mrf.mxu0
    %v723 = vadd.f32 0.0, %v722
    %724 = vdwg.mxu0
    %725 = vrot.lane.b32.xlu0 %v286, 48
    %v726 = vpop.permute.xlu0 %725
    %v729 = vsel %vm295, %v698, 0
    %731 = vmatpush.msra.mxu0 0.0
    %732 = vmatpush.msra.mxu0 0.0
    %733 = vmatpush.msra.mxu0 0.0
    %734 = vmatpush.msra.mxu0 0.0
    %735 = vmatpush.msra.mxu0 0.0
    %736 = vmatpush.msra.mxu0 0.0
    %737 = vmatpush.msra.mxu0 0.0
    %738 = vmatpush.msra.mxu0 0.0
    %739 = vmatpush.msra.mxu0 0.0
    %740 = vmatpush.msra.mxu0 0.0
    %741 = vmatpush.msra.mxu0 0.0
    %742 = vmatpush.msra.mxu0 0.0
    %743 = vmatpush.msra.mxu0 0.0
    %744 = vmatpush.msra.mxu0 0.0
    %745 = vmatpush.msra.mxu0 0.0
    %746 = vmatpush.msra.mxu0 %v726
    %747 = vmatmul.f32.gmra.mxu0 %v729
    %v748 = vpop.f32.mrf.mxu0
    %v749 = vadd.f32 0.0, %v748
    %750 = vdwg.mxu0
    %v752 = vsel %vm295, %v723, 0
    %v755 = vsel %vm295, %v749, 0
    %757 = vmatpush.msra.mxu0 0.0
    %758 = vmatpush.msra.mxu0 0.0
    %759 = vmatpush.msra.mxu0 0.0
    %760 = vmatpush.msra.mxu0 0.0
    %761 = vmatpush.msra.mxu0 0.0
    %762 = vmatpush.msra.mxu0 0.0
    %763 = vmatpush.msra.mxu0 0.0
    %764 = vmatpush.msra.mxu0 0.0
    %765 = vmatpush.msra.mxu0 0.0
    %766 = vmatpush.msra.mxu0 0.0
    %767 = vmatpush.msra.mxu0 0.0
    %768 = vmatpush.msra.mxu0 0.0
    %769 = vmatpush.msra.mxu0 0.0
    %770 = vmatpush.msra.mxu0 0.0
    %771 = vmatpush.msra.mxu0 0.0
    %772 = vmatpush.msra.mxu0 %v290
    %773 = vmatmul.f32.gmra.mxu0 %v752
    %v774 = vpop.f32.mrf.mxu0
    %v775 = vadd.f32 0.0, %v774
    %776 = vmatmul.f32.gmra.mxu0 %v755
    %v777 = vpop.f32.mrf.mxu0
    %v778 = vadd.f32 0.0, %v777
    %779 = vdwg.mxu0
    %v780 = vadd.f32 %v612, %v775
    %v781 = vadd.f32 %v615, %v778
    %782 = vrot.lane.b32.xlu0 %v283, 104
    %v783 = vpop.permute.xlu0 %782
    %784 = vrot.lane.b32.xlu0 %v283, 72
    %v785 = vpop.permute.xlu0 %784
    %v786 = vsel %vm295, %v783, 0
    %v788 = vsel %vm295, %v785, 0
    %790 = vmatpush.xpose.msra.mxu0 0.0
    %791 = vmatpush.xpose.msra.mxu0 0.0
    %792 = vmatpush.xpose.msra.mxu0 0.0
    %793 = vmatpush.xpose.msra.mxu0 0.0
    %794 = vmatpush.xpose.msra.mxu0 0.0
    %795 = vmatpush.xpose.msra.mxu0 0.0
    %796 = vmatpush.xpose.msra.mxu0 0.0
    %797 = vmatpush.xpose.msra.mxu0 0.0
    %798 = vmatpush.xpose.msra.mxu0 0.0
    %799 = vmatpush.xpose.msra.mxu0 0.0
    %800 = vmatpush.xpose.msra.mxu0 0.0
    %801 = vmatpush.xpose.msra.mxu0 0.0
    %802 = vmatpush.xpose.msra.mxu0 0.0
    %803 = vmatpush.xpose.msra.mxu0 0.0
    %804 = vmatpush.xpose.msra.mxu0 0.0
    %805 = vmatpush.xpose.msra.mxu0 %v788
    %806 = vmatmul.f32.gmra.mxu0 %v786
    %v807 = vpop.f32.mrf.mxu0
    %v808 = vadd.f32 0.0, %v807
    %809 = vdwg.mxu0
    %810 = vrot.lane.b32.xlu0 %v286, 104
    %v811 = vpop.permute.xlu0 %810
    %812 = vrot.lane.b32.xlu0 %v286, 72
    %v813 = vpop.permute.xlu0 %812
    %v814 = vsel %vm295, %v811, 0
    %v816 = vsel %vm295, %v813, 0
    %818 = vmatpush.xpose.msra.mxu0 0.0
    %819 = vmatpush.xpose.msra.mxu0 0.0
    %820 = vmatpush.xpose.msra.mxu0 0.0
    %821 = vmatpush.xpose.msra.mxu0 0.0
    %822 = vmatpush.xpose.msra.mxu0 0.0
    %823 = vmatpush.xpose.msra.mxu0 0.0
    %824 = vmatpush.xpose.msra.mxu0 0.0
    %825 = vmatpush.xpose.msra.mxu0 0.0
    %826 = vmatpush.xpose.msra.mxu0 0.0
    %827 = vmatpush.xpose.msra.mxu0 0.0
    %828 = vmatpush.xpose.msra.mxu0 0.0
    %829 = vmatpush.xpose.msra.mxu0 0.0
    %830 = vmatpush.xpose.msra.mxu0 0.0
    %831 = vmatpush.xpose.msra.mxu0 0.0
    %832 = vmatpush.xpose.msra.mxu0 0.0
    %833 = vmatpush.xpose.msra.mxu0 %v816
    %834 = vmatmul.f32.gmra.mxu0 %v814
    %v835 = vpop.f32.mrf.mxu0
    %v836 = vadd.f32 0.0, %v835
    %837 = vdwg.mxu0
    %v838 = vmul.f32 %v808, 0.35355338
    %v839 = vmul.f32 %v836, 0.35355338
    %v840 = vadd.f32 %v838, %v186
    %v841 = vadd.f32 %v839, %v186
    %v842 = vsel %vm295, %v840, -inf
    %843 = vmax.xlane.f32.xlu0 %v842
    %v844 = vpop.xlane.xlu0 %843
    %v845 = vsel %vm295, %v841, -inf
    %846 = vmax.xlane.f32.xlu0 %v845
    %v847 = vpop.xlane.xlu0 %846
    %v848 = vsub.f32 %v840, %v844
    %v849 = vsub.f32 %v841, %v847
    %v850 = vmul.f32 %v848, 1.442695
    %v851 = vpow.pop %v850
    %v852 = vmul.f32 %v849, 1.442695
    %v853 = vpow.pop %v852
    %v854 = vsel %vm295, %v851, 0.0
    %855 = vadd.xlane.f32.xlu0 %v854
    %v856 = vpop.xlane.xlu0 %855
    %v857 = vsel %vm295, %v853, 0.0
    %858 = vadd.xlane.f32.xlu0 %v857
    %v859 = vpop.xlane.xlu0 %858
    %v860 = vrcp.pop %v856
    %v861 = vrcp.pop %v859
    %v862 = vmul.f32 %v851, %v860
    %v863 = vmul.f32 %v853, %v861
    %864 = vrot.lane.b32.xlu0 %v283, 40
    %v865 = vpop.permute.xlu0 %864
    %v868 = vsel %vm295, %v862, 0
    %870 = vmatpush.msra.mxu0 0.0
    %871 = vmatpush.msra.mxu0 0.0
    %872 = vmatpush.msra.mxu0 0.0
    %873 = vmatpush.msra.mxu0 0.0
    %874 = vmatpush.msra.mxu0 0.0
    %875 = vmatpush.msra.mxu0 0.0
    %876 = vmatpush.msra.mxu0 0.0
    %877 = vmatpush.msra.mxu0 0.0
    %878 = vmatpush.msra.mxu0 0.0
    %879 = vmatpush.msra.mxu0 0.0
    %880 = vmatpush.msra.mxu0 0.0
    %881 = vmatpush.msra.mxu0 0.0
    %882 = vmatpush.msra.mxu0 0.0
    %883 = vmatpush.msra.mxu0 0.0
    %884 = vmatpush.msra.mxu0 0.0
    %885 = vmatpush.msra.mxu0 %v865
    %886 = vmatmul.f32.gmra.mxu0 %v868
    %v887 = vpop.f32.mrf.mxu0
    %v888 = vadd.f32 0.0, %v887
    %889 = vdwg.mxu0
    %890 = vrot.lane.b32.xlu0 %v286, 40
    %v891 = vpop.permute.xlu0 %890
    %v894 = vsel %vm295, %v863, 0
    %896 = vmatpush.msra.mxu0 0.0
    %897 = vmatpush.msra.mxu0 0.0
    %898 = vmatpush.msra.mxu0 0.0
    %899 = vmatpush.msra.mxu0 0.0
    %900 = vmatpush.msra.mxu0 0.0
    %901 = vmatpush.msra.mxu0 0.0
    %902 = vmatpush.msra.mxu0 0.0
    %903 = vmatpush.msra.mxu0 0.0
    %904 = vmatpush.msra.mxu0 0.0
    %905 = vmatpush.msra.mxu0 0.0
    %906 = vmatpush.msra.mxu0 0.0
    %907 = vmatpush.msra.mxu0 0.0
    %908 = vmatpush.msra.mxu0 0.0
    %909 = vmatpush.msra.mxu0 0.0
    %910 = vmatpush.msra.mxu0 0.0
    %911 = vmatpush.msra.mxu0 %v891
    %912 = vmatmul.f32.gmra.mxu0 %v894
    %v913 = vpop.f32.mrf.mxu0
    %v914 = vadd.f32 0.0, %v913
    %915 = vdwg.mxu0
    %v917 = vsel %vm295, %v888, 0
    %v920 = vsel %vm295, %v914, 0
    %922 = vmatpush.msra.mxu0 0.0
    %923 = vmatpush.msra.mxu0 0.0
    %924 = vmatpush.msra.mxu0 0.0
    %925 = vmatpush.msra.mxu0 0.0
    %926 = vmatpush.msra.mxu0 0.0
    %927 = vmatpush.msra.mxu0 0.0
    %928 = vmatpush.msra.mxu0 0.0
    %929 = vmatpush.msra.mxu0 0.0
    %930 = vmatpush.msra.mxu0 0.0
    %931 = vmatpush.msra.mxu0 0.0
    %932 = vmatpush.msra.mxu0 0.0
    %933 = vmatpush.msra.mxu0 0.0
    %934 = vmatpush.msra.mxu0 0.0
    %935 = vmatpush.msra.mxu0 0.0
    %936 = vmatpush.msra.mxu0 0.0
    %937 = vmatpush.msra.mxu0 %v291
    %938 = vmatmul.f32.gmra.mxu0 %v917
    %v939 = vpop.f32.mrf.mxu0
    %v940 = vadd.f32 0.0, %v939
    %941 = vmatmul.f32.gmra.mxu0 %v920
    %v942 = vpop.f32.mrf.mxu0
    %v943 = vadd.f32 0.0, %v942
    %944 = vdwg.mxu0
    %v945 = vadd.f32 %v780, %v940
    %v946 = vadd.f32 %v781, %v943
    %v947 = vadd.f32 %v178, %v945
    %v948 = vadd.f32 %v181, %v946
    %v949 = vld [vmem:[%s17] sm:$0x1]
    %v951 = vperm.slane %v949, 0
    %v953 = vadd.f32 %v947, %v951
    %v954 = vadd.f32 %v948, %v951
    %v955 = vld [vmem:[%s19] sm:$0x1]
    %v956 = vld [vmem:[%s21] sm:$0x1]
    %v957 = vsel %vm189, %v953, 0.0
    %958 = vadd.xlane.f32.xlu0 %v957
    %v959 = vpop.xlane.xlu0 %958
    %v960 = vsel %vm189, %v954, 0.0
    %961 = vadd.xlane.f32.xlu0 %v960
    %v962 = vpop.xlane.xlu0 %961
    %v963 = vmul.f32 %v959, %v202
    %v964 = vmul.f32 %v962, %v202
    %v965 = vsub.f32 %v953, %v963
    %v966 = vsub.f32 %v954, %v964
    %v967 = vmul.f32 %v965, %v965
    %v968 = vmul.f32 %v966, %v966
    %v969 = vsel %vm189, %v967, 0.0
    %970 = vadd.xlane.f32.xlu0 %v969
    %v971 = vpop.xlane.xlu0 %970
    %v972 = vsel %vm189, %v968, 0.0
    %973 = vadd.xlane.f32.xlu0 %v972
    %v974 = vpop.xlane.xlu0 %973
    %v975 = vmul.f32 %v971, %v202
    %v976 = vmul.f32 %v974, %v202
    %v977 = vadd.f32 %v975, 1e-05
    %v978 = vadd.f32 %v976, 1e-05
    %v979 = vrsqrt.pop %v977
    %v980 = vmul.f32 %v979, %v977
    %v981 = vmul.f32 %v980, %v979
    %v982 = vmul.f32 0.5, %v981
    %v983 = vsub.f32 1.5, %v982
    %v984 = vmul.f32 %v979, %v983
    %vm985 = vweird.f32 %v977
    %vm986 = vweird.f32 %v979
    %vm987 = vmor %vm985, %vm986
    %v988 = vsel %vm987, %v979, %v984
    %v989 = vrsqrt.pop %v978
    %v990 = vmul.f32 %v989, %v978
    %v991 = vmul.f32 %v990, %v989
    %v992 = vmul.f32 0.5, %v991
    %v993 = vsub.f32 1.5, %v992
    %v994 = vmul.f32 %v989, %v993
    %vm995 = vweird.f32 %v978
    %vm996 = vweird.f32 %v989
    %vm997 = vmor %vm995, %vm996
    %v998 = vsel %vm997, %v989, %v994
    %v999 = vmul.f32 %v965, %v988
    %v1000 = vmul.f32 %v966, %v998
    %v1002 = vperm.slane %v955, 0
    %v1004 = vmul.f32 %v999, %v1002
    %v1005 = vmul.f32 %v1000, %v1002
    %v1007 = vperm.slane %v956, 0
    %v1009 = vadd.f32 %v1004, %v1007
    %v1010 = vadd.f32 %v1005, %v1007
    %v1011 = vld [vmem:[%s23] sm:$0xff]
    %v1012 = vld [vmem:[%s23 + $0x8] sm:$0xff]
    %v1013 = vld [vmem:[%s23 + $0x10] sm:$0xff]
    %v1014 = vld [vmem:[%s23 + $0x18] sm:$0xff]
    %v1015 = vld [vmem:[%s25] sm:$0x1]
    %v1017 = vperm.slane %v1015, 0
    %v1020 = vsel %vm189, %v1009, 0
    %v1023 = vsel %vm189, %v1010, 0
    %1025 = vmatpush.msra.mxu0 0.0
    %1026 = vmatpush.msra.mxu0 0.0
    %1027 = vmatpush.msra.mxu0 0.0
    %1028 = vmatpush.msra.mxu0 0.0
    %1029 = vmatpush.msra.mxu0 0.0
    %1030 = vmatpush.msra.mxu0 0.0
    %1031 = vmatpush.msra.mxu0 0.0
    %1032 = vmatpush.msra.mxu0 0.0
    %1033 = vmatpush.msra.mxu0 0.0
    %1034 = vmatpush.msra.mxu0 0.0
    %1035 = vmatpush.msra.mxu0 0.0
    %1036 = vmatpush.msra.mxu0 0.0
    %1037 = vmatpush.msra.mxu0 %v1014
    %1038 = vmatpush.msra.mxu0 %v1013
    %1039 = vmatpush.msra.mxu0 %v1012
    %1040 = vmatpush.msra.mxu0 %v1011
    %1041 = vmatmul.f32.gmra.mxu0 %v1020
    %v1042 = vpop.f32.mrf.mxu0
    %v1043 = vadd.f32 %v1017, %v1042
    %1044 = vmatmul.f32.gmra.mxu0 %v1023
    %v1045 = vpop.f32.mrf.mxu0
    %v1046 = vadd.f32 %v1017, %v1045
    %1047 = vdwg.mxu0
    %v1048 = vmul.f32 %v1043, 0.5
    %v1049 = vmul.f32 %v1046, 0.5
    %v1050 = vmul.f32 %v1043, 0.044715
    %v1051 = vmul.f32 %v1046, 0.044715
    %v1052 = vmul.f32 %v1050, %v1043
    %v1053 = vmul.f32 %v1051, %v1046
    %v1054 = vmul.f32 %v1052, %v1043
    %v1055 = vmul.f32 %v1053, %v1046
    %v1056 = vadd.f32 %v1043, %v1054
    %v1057 = vadd.f32 %v1046, %v1055
    %v1058 = vmul.f32 %v1056, 0.7978846
    %v1059 = vmul.f32 %v1057, 0.7978846
    %v1060 = vtanh.pop %v1058
    %v1061 = vtanh.pop %v1059
    %v1062 = vadd.f32 %v1060, 1.0
    %v1063 = vadd.f32 %v1061, 1.0
    %v1064 = vmul.f32 %v1048, %v1062
    %v1065 = vmul.f32 %v1049, %v1063
    %v1066 = vld [vmem:[%s27] sm:$0xff]
    %v1067 = vld [vmem:[%s27 + $0x8] sm:$0xff]
    %v1068 = vld [vmem:[%s27 + $0x10] sm:$0xff]
    %v1069 = vld [vmem:[%s27 + $0x18] sm:$0xff]
    %v1070 = vld [vmem:[%s27 + $0x20] sm:$0xff]
    %v1071 = vld [vmem:[%s27 + $0x28] sm:$0xff]
    %v1072 = vld [vmem:[%s27 + $0x30] sm:$0xff]
    %v1073 = vld [vmem:[%s27 + $0x38] sm:$0xff]
    %v1074 = vld [vmem:[%s27 + $0x40] sm:$0xff]
    %v1075 = vld [vmem:[%s27 + $0x48] sm:$0xff]
    %v1076 = vld [vmem:[%s27 + $0x50] sm:$0xff]
    %v1077 = vld [vmem:[%s27 + $0x58] sm:$0xff]
    %v1078 = vld [vmem:[%s27 + $0x60] sm:$0xff]
    %v1079 = vld [vmem:[%s27 + $0x68] sm:$0xff]
    %v1080 = vld [vmem:[%s27 + $0x70] sm:$0xff]
    %v1081 = vld [vmem:[%s27 + $0x78] sm:$0xff]
    %v1082 = vld [vmem:[%s29] sm:$0x1]
    %v1084 = vperm.slane %v1082, 0
    %1086 = vmatpush.msra.mxu0 %v1081
    %1087 = vmatpush.msra.mxu0 %v1080
    %1088 = vmatpush.msra.mxu0 %v1079
    %1089 = vmatpush.msra.mxu0 %v1078
    %1090 = vmatpush.msra.mxu0 %v1077
    %1091 = vmatpush.msra.mxu0 %v1076
    %1092 = vmatpush.msra.mxu0 %v1075
    %1093 = vmatpush.msra.mxu0 %v1074
    %1094 = vmatpush.msra.mxu0 %v1073
    %1095 = vmatpush.msra.mxu0 %v1072
    %1096 = vmatpush.msra.mxu0 %v1071
    %1097 = vmatpush.msra.mxu0 %v1070
    %1098 = vmatpush.msra.mxu0 %v1069
    %1099 = vmatpush.msra.mxu0 %v1068
    %1100 = vmatpush.msra.mxu0 %v1067
    %1101 = vmatpush.msra.mxu0 %v1066
    %1102 = vmatmul.f32.gmra.mxu0 %v1064
    %v1103 = vpop.f32.mrf.mxu0
    %v1104 = vadd.f32 %v1084, %v1103
    %1105 = vmatmul.f32.gmra.mxu0 %v1065
    %v1106 = vpop.f32.mrf.mxu0
    %v1107 = vadd.f32 %v1084, %v1106
    %1108 = vdwg.mxu0
    %v1109 = vadd.f32 %v953, %v1104
    %v1110 = vadd.f32 %v954, %v1107
    %v1111 = vld [vmem:[%s31] sm:$0x1]
    %v1112 = vld [vmem:[%s33] sm:$0x1]
    %v1113 = vsel %vm189, %v1109, 0.0
    %1114 = vadd.xlane.f32.xlu0 %v1113
    %v1115 = vpop.xlane.xlu0 %1114
    %v1116 = vsel %vm189, %v1110, 0.0
    %1117 = vadd.xlane.f32.xlu0 %v1116
    %v1118 = vpop.xlane.xlu0 %1117
    %v1119 = vmul.f32 %v1115, %v202
    %v1120 = vmul.f32 %v1118, %v202
    %v1121 = vsub.f32 %v1109, %v1119
    %v1122 = vsub.f32 %v1110, %v1120
    %v1123 = vmul.f32 %v1121, %v1121
    %v1124 = vmul.f32 %v1122, %v1122
    %v1125 = vsel %vm189, %v1123, 0.0
    %1126 = vadd.xlane.f32.xlu0 %v1125
    %v1127 = vpop.xlane.xlu0 %1126
    %v1128 = vsel %vm189, %v1124, 0.0
    %1129 = vadd.xlane.f32.xlu0 %v1128
    %v1130 = vpop.xlane.xlu0 %1129
    %v1131 = vmul.f32 %v1127, %v202
    %v1132 = vmul.f32 %v1130, %v202
    %v1133 = vadd.f32 %v1131, 1e-05
    %v1134 = vadd.f32 %v1132, 1e-05
    %v1135 = vrsqrt.pop %v1133
    %v1136 = vmul.f32 %v1135, %v1133
    %v1137 = vmul.f32 %v1136, %v1135
    %v1138 = vmul.f32 0.5, %v1137
    %v1139 = vsub.f32 1.5, %v1138
    %v1140 = vmul.f32 %v1135, %v1139
    %vm1141 = vweird.f32 %v1133
    %vm1142 = vweird.f32 %v1135
    %vm1143 = vmor %vm1141, %vm1142
    %v1144 = vsel %vm1143, %v1135, %v1140
    %v1145 = vrsqrt.pop %v1134
    %v1146 = vmul.f32 %v1145, %v1134
    %v1147 = vmul.f32 %v1146, %v1145
    %v1148 = vmul.f32 0.5, %v1147
    %v1149 = vsub.f32 1.5, %v1148
    %v1150 = vmul.f32 %v1145, %v1149
    %vm1151 = vweird.f32 %v1134
    %vm1152 = vweird.f32 %v1145
    %vm1153 = vmor %vm1151, %vm1152
    %v1154 = vsel %vm1153, %v1145, %v1150
    %v1155 = vmul.f32 %v1121, %v1144
    %v1156 = vmul.f32 %v1122, %v1154
    %v1158 = vperm.slane %v1111, 0
    %v1160 = vmul.f32 %v1155, %v1158
    %v1161 = vmul.f32 %v1156, %v1158
    %v1163 = vperm.slane %v1112, 0
    %v1165 = vadd.f32 %v1160, %v1163
    %v1166 = vadd.f32 %v1161, %v1163
    %v1167 = vld [vmem:[%s35] sm:$0xff]
    %v1168 = vld [vmem:[%s35 + $0x8] sm:$0xff]
    %v1169 = vld [vmem:[%s35 + $0x10] sm:$0xff]
    %v1170 = vld [vmem:[%s35 + $0x18] sm:$0xff]
    %v1171 = vld [vmem:[%s37] sm:$0x1]
    %v1173 = vperm.slane %v1171, 0
    %v1176 = vsel %vm189, %v1165, 0
    %v1179 = vsel %vm189, %v1166, 0
    %1181 = vmatpush.msra.mxu0 0.0
    %1182 = vmatpush.msra.mxu0 0.0
    %1183 = vmatpush.msra.mxu0 0.0
    %1184 = vmatpush.msra.mxu0 0.0
    %1185 = vmatpush.msra.mxu0 0.0
    %1186 = vmatpush.msra.mxu0 0.0
    %1187 = vmatpush.msra.mxu0 0.0
    %1188 = vmatpush.msra.mxu0 0.0
    %1189 = vmatpush.msra.mxu0 0.0
    %1190 = vmatpush.msra.mxu0 0.0
    %1191 = vmatpush.msra.mxu0 0.0
    %1192 = vmatpush.msra.mxu0 0.0
    %1193 = vmatpush.msra.mxu0 %v1170
    %1194 = vmatpush.msra.mxu0 %v1169
    %1195 = vmatpush.msra.mxu0 %v1168
    %1196 = vmatpush.msra.mxu0 %v1167
    %1197 = vmatmul.f32.gmra.mxu0 %v1176
    %v1198 = vpop.f32.mrf.mxu0
    %v1199 = vadd.f32 %v1173, %v1198
    %1200 = vmatmul.f32.gmra.mxu0 %v1179
    %v1201 = vpop.f32.mrf.mxu0
    %v1202 = vadd.f32 %v1173, %v1201
    %1203 = vdwg.mxu0
    %v1204 = vld [vmem:[%s39] sm:$0xff]
    %v1205 = vld [vmem:[%s39 + $0x8] sm:$0xff]
    %v1206 = vld [vmem:[%s39 + $0x10] sm:$0xff]
    %v1207 = vld [vmem:[%s39 + $0x18] sm:$0xff]
    %1209 = vrot.lane.b32.xlu0 %v1199, 96
    %v1210 = vpop.permute.xlu0 %1209
    %v1211 = vsel %vm295, %v1199, 0
    %v1213 = vsel %vm295, %v1210, 0
    %1215 = vmatpush.xpose.msra.mxu0 0.0
    %1216 = vmatpush.xpose.msra.mxu0 0.0
    %1217 = vmatpush.xpose.msra.mxu0 0.0
    %1218 = vmatpush.xpose.msra.mxu0 0.0
    %1219 = vmatpush.xpose.msra.mxu0 0.0
    %1220 = vmatpush.xpose.msra.mxu0 0.0
    %1221 = vmatpush.xpose.msra.mxu0 0.0
    %1222 = vmatpush.xpose.msra.mxu0 0.0
    %1223 = vmatpush.xpose.msra.mxu0 0.0
    %1224 = vmatpush.xpose.msra.mxu0 0.0
    %1225 = vmatpush.xpose.msra.mxu0 0.0
    %1226 = vmatpush.xpose.msra.mxu0 0.0
    %1227 = vmatpush.xpose.msra.mxu0 0.0
    %1228 = vmatpush.xpose.msra.mxu0 0.0
    %1229 = vmatpush.xpose.msra.mxu0 0.0
    %1230 = vmatpush.xpose.msra.mxu0 %v1213
    %1231 = vmatmul.f32.gmra.mxu0 %v1211
    %v1232 = vpop.f32.mrf.mxu0
    %v1233 = vadd.f32 0.0, %v1232
    %1234 = vdwg.mxu0
    %1236 = vrot.lane.b32.xlu0 %v1202, 96
    %v1237 = vpop.permute.xlu0 %1236
    %v1238 = vsel %vm295, %v1202, 0
    %v1240 = vsel %vm295, %v1237, 0
    %1242 = vmatpush.xpose.msra.mxu0 0.0
    %1243 = vmatpush.xpose.msra.mxu0 0.0
    %1244 = vmatpush.xpose.msra.mxu0 0.0
    %1245 = vmatpush.xpose.msra.mxu0 0.0
    %1246 = vmatpush.xpose.msra.mxu0 0.0
    %1247 = vmatpush.xpose.msra.mxu0 0.0
    %1248 = vmatpush.xpose.msra.mxu0 0.0
    %1249 = vmatpush.xpose.msra.mxu0 0.0
    %1250 = vmatpush.xpose.msra.mxu0 0.0
    %1251 = vmatpush.xpose.msra.mxu0 0.0
    %1252 = vmatpush.xpose.msra.mxu0 0.0
    %1253 = vmatpush.xpose.msra.mxu0 0.0
    %1254 = vmatpush.xpose.msra.mxu0 0.0
    %1255 = vmatpush.xpose.msra.mxu0 0.0
    %1256 = vmatpush.xpose.msra.mxu0 0.0
    %1257 = vmatpush.xpose.msra.mxu0 %v1240
    %1258 = vmatmul.f32.gmra.mxu0 %v1238
    %v1259 = vpop.f32.mrf.mxu0
    %v1260 = vadd.f32 0.0, %v1259
    %1261 = vdwg.mxu0
    %v1262 = vmul.f32 %v1233, 0.35355338
    %v1263 = vmul.f32 %v1260, 0.35355338
    %v1264 = vadd.f32 %v1262, %v186
    %v1265 = vadd.f32 %v1263, %v186
    %v1266 = vsel %vm295, %v1264, -inf
    %1267 = vmax.xlane.f32.xlu0 %v1266
    %v1268 = vpop.xlane.xlu0 %1267
    %v1269 = vsel %vm295, %v1265, -inf
    %1270 = vmax.xlane.f32.xlu0 %v1269
    %v1271 = vpop.xlane.xlu0 %1270
    %v1272 = vsub.f32 %v1264, %v1268
    %v1273 = vsub.f32 %v1265, %v1271
    %v1274 = vmul.f32 %v1272, 1.442695
    %v1275 = vpow.pop %v1274
    %v1276 = vmul.f32 %v1273, 1.442695
    %v1277 = vpow.pop %v1276
    %v1278 = vsel %vm295, %v1275, 0.0
    %1279 = vadd.xlane.f32.xlu0 %v1278
    %v1280 = vpop.xlane.xlu0 %1279
    %v1281 = vsel %vm295, %v1277, 0.0
    %1282 = vadd.xlane.f32.xlu0 %v1281
    %v1283 = vpop.xlane.xlu0 %1282
    %v1284 = vrcp.pop %v1280
    %v1285 = vrcp.pop %v1283
    %v1286 = vmul.f32 %v1275, %v1284
    %v1287 = vmul.f32 %v1277, %v1285
    %1288 = vrot.lane.b32.xlu0 %v1199, 64
    %v1289 = vpop.permute.xlu0 %1288
    %v1292 = vsel %vm295, %v1286, 0
    %1294 = vmatpush.msra.mxu0 0.0
    %1295 = vmatpush.msra.mxu0 0.0
    %1296 = vmatpush.msra.mxu0 0.0
    %1297 = vmatpush.msra.mxu0 0.0
    %1298 = vmatpush.msra.mxu0 0.0
    %1299 = vmatpush.msra.mxu0 0.0
    %1300 = vmatpush.msra.mxu0 0.0
    %1301 = vmatpush.msra.mxu0 0.0
    %1302 = vmatpush.msra.mxu0 0.0
    %1303 = vmatpush.msra.mxu0 0.0
    %1304 = vmatpush.msra.mxu0 0.0
    %1305 = vmatpush.msra.mxu0 0.0
    %1306 = vmatpush.msra.mxu0 0.0
    %1307 = vmatpush.msra.mxu0 0.0
    %1308 = vmatpush.msra.mxu0 0.0
    %1309 = vmatpush.msra.mxu0 %v1289
    %1310 = vmatmul.f32.gmra.mxu0 %v1292
    %v1311 = vpop.f32.mrf.mxu0
    %v1312 = vadd.f32 0.0, %v1311
    %1313 = vdwg.mxu0
    %1314 = vrot.lane.b32.xlu0 %v1202, 64
    %v1315 = vpop.permute.xlu0 %1314
    %v1318 = vsel %vm295, %v1287, 0
    %1320 = vmatpush.msra.mxu0 0.0
    %1321 = vmatpush.msra.mxu0 0.0
    %1322 = vmatpush.msra.mxu0 0.0
    %1323 = vmatpush.msra.mxu0 0.0
    %1324 = vmatpush.msra.mxu0 0.0
    %1325 = vmatpush.msra.mxu0 0.0
    %1326 = vmatpush.msra.mxu0 0.0
    %1327 = vmatpush.msra.mxu0 0.0
    %1328 = vmatpush.msra.mxu0 0.0
    %1329 = vmatpush.msra.mxu0 0.0
    %1330 = vmatpush.msra.mxu0 0.0
    %1331 = vmatpush.msra.mxu0 0.0
    %1332 = vmatpush.msra.mxu0 0.0
    %1333 = vmatpush.msra.mxu0 0.0
    %1334 = vmatpush.msra.mxu0 0.0
    %1335 = vmatpush.msra.mxu0 %v1315
    %1336 = vmatmul.f32.gmra.mxu0 %v1318
    %v1337 = vpop.f32.mrf.mxu0
    %v1338 = vadd.f32 0.0, %v1337
    %1339 = vdwg.mxu0
    %1340 = vrot.lane.b32.xlu0 %v1199, 120
    %v1341 = vpop.permute.xlu0 %1340
    %1342 = vrot.lane.b32.xlu0 %v1199, 88
    %v1343 = vpop.permute.xlu0 %1342
    %v1344 = vsel %vm295, %v1341, 0
    %v1346 = vsel %vm295, %v1343, 0
    %1348 = vmatpush.xpose.msra.mxu0 0.0
    %1349 = vmatpush.xpose.msra.mxu0 0.0
    %1350 = vmatpush.xpose.msra.mxu0 0.0
    %1351 = vmatpush.xpose.msra.mxu0 0.0
    %1352 = vmatpush.xpose.msra.mxu0 0.0
    %1353 = vmatpush.xpose.msra.mxu0 0.0
    %1354 = vmatpush.xpose.msra.mxu0 0.0
    %1355 = vmatpush.xpose.msra.mxu0 0.0
    %1356 = vmatpush.xpose.msra.mxu0 0.0
    %1357 = vmatpush.xpose.msra.mxu0 0.0
    %1358 = vmatpush.xpose.msra.mxu0 0.0
    %1359 = vmatpush.xpose.msra.mxu0 0.0
    %1360 = vmatpush.xpose.msra.mxu0 0.0
    %1361 = vmatpush.xpose.msra.mxu0 0.0
    %1362 = vmatpush.xpose.msra.mxu0 0.0
    %1363 = vmatpush.xpose.msra.mxu0 %v1346
    %1364 = vmatmul.f32.gmra.mxu0 %v1344
    %v1365 = vpop.f32.mrf.mxu0
    %v1366 = vadd.f32 0.0, %v1365
    %1367 = vdwg.mxu0
    %1368 = vrot.lane.b32.xlu0 %v1202, 120
    %v1369 = vpop.permute.xlu0 %1368
    %1370 = vrot.lane.b32.xlu0 %v1202, 88
    %v1371 = vpop.permute.xlu0 %1370
    %v1372 = vsel %vm295, %v1369, 0
    %v1374 = vsel %vm295, %v1371, 0
    %1376 = vmatpush.xpose.msra.mxu0 0.0
    %1377 = vmatpush.xpose.msra.mxu0 0.0
    %1378 = vmatpush.xpose.msra.mxu0 0.0
    %1379 = vmatpush.xpose.msra.mxu0 0.0
    %1380 = vmatpush.xpose.msra.mxu0 0.0
    %1381 = vmatpush.xpose.msra.mxu0 0.0
    %1382 = vmatpush.xpose.msra.mxu0 0.0
    %1383 = vmatpush.xpose.msra.mxu0 0.0
    %1384 = vmatpush.xpose.msra.mxu0 0.0
    %1385 = vmatpush.xpose.msra.mxu0 0.0
    %1386 = vmatpush.xpose.msra.mxu0 0.0
    %1387 = vmatpush.xpose.msra.mxu0 0.0
    %1388 = vmatpush.xpose.msra.mxu0 0.0
    %1389 = vmatpush.xpose.msra.mxu0 0.0
    %1390 = vmatpush.xpose.msra.mxu0 0.0
    %1391 = vmatpush.xpose.msra.mxu0 %v1374
    %1392 = vmatmul.f32.gmra.mxu0 %v1372
    %v1393 = vpop.f32.mrf.mxu0
    %v1394 = vadd.f32 0.0, %v1393
    %1395 = vdwg.mxu0
    %v1396 = vmul.f32 %v1366, 0.35355338
    %v1397 = vmul.f32 %v1394, 0.35355338
    %v1398 = vadd.f32 %v1396, %v186
    %v1399 = vadd.f32 %v1397, %v186
    %v1400 = vsel %vm295, %v1398, -inf
    %1401 = vmax.xlane.f32.xlu0 %v1400
    %v1402 = vpop.xlane.xlu0 %1401
    %v1403 = vsel %vm295, %v1399, -inf
    %1404 = vmax.xlane.f32.xlu0 %v1403
    %v1405 = vpop.xlane.xlu0 %1404
    %v1406 = vsub.f32 %v1398, %v1402
    %v1407 = vsub.f32 %v1399, %v1405
    %v1408 = vmul.f32 %v1406, 1.442695
    %v1409 = vpow.pop %v1408
    %v1410 = vmul.f32 %v1407, 1.442695
    %v1411 = vpow.pop %v1410
    %v1412 = vsel %vm295, %v1409, 0.0
    %1413 = vadd.xlane.f32.xlu0 %v1412
    %v1414 = vpop.xlane.xlu0 %1413
    %v1415 = vsel %vm295, %v1411, 0.0
    %1416 = vadd.xlane.f32.xlu0 %v1415
    %v1417 = vpop.xlane.xlu0 %1416
    %v1418 = vrcp.pop %v1414
    %v1419 = vrcp.pop %v1417
    %v1420 = vmul.f32 %v1409, %v1418
    %v1421 = vmul.f32 %v1411, %v1419
    %1422 = vrot.lane.b32.xlu0 %v1199, 56
    %v1423 = vpop.permute.xlu0 %1422
    %v1426 = vsel %vm295, %v1420, 0
    %1428 = vmatpush.msra.mxu0 0.0
    %1429 = vmatpush.msra.mxu0 0.0
    %1430 = vmatpush.msra.mxu0 0.0
    %1431 = vmatpush.msra.mxu0 0.0
    %1432 = vmatpush.msra.mxu0 0.0
    %1433 = vmatpush.msra.mxu0 0.0
    %1434 = vmatpush.msra.mxu0 0.0
    %1435 = vmatpush.msra.mxu0 0.0
    %1436 = vmatpush.msra.mxu0 0.0
    %1437 = vmatpush.msra.mxu0 0.0
    %1438 = vmatpush.msra.mxu0 0.0
    %1439 = vmatpush.msra.mxu0 0.0
    %1440 = vmatpush.msra.mxu0 0.0
    %1441 = vmatpush.msra.mxu0 0.0
    %1442 = vmatpush.msra.mxu0 0.0
    %1443 = vmatpush.msra.mxu0 %v1423
    %1444 = vmatmul.f32.gmra.mxu0 %v1426
    %v1445 = vpop.f32.mrf.mxu0
    %v1446 = vadd.f32 0.0, %v1445
    %1447 = vdwg.mxu0
    %1448 = vrot.lane.b32.xlu0 %v1202, 56
    %v1449 = vpop.permute.xlu0 %1448
    %v1452 = vsel %vm295, %v1421, 0
    %1454 = vmatpush.msra.mxu0 0.0
    %1455 = vmatpush.msra.mxu0 0.0
    %1456 = vmatpush.msra.mxu0 0.0
    %1457 = vmatpush.msra.mxu0 0.0
    %1458 = vmatpush.msra.mxu0 0.0
    %1459 = vmatpush.msra.mxu0 0.0
    %1460 = vmatpush.msra.mxu0 0.0
    %1461 = vmatpush.msra.mxu0 0.0
    %1462 = vmatpush.msra.mxu0 0.0
    %1463 = vmatpush.msra.mxu0 0.0
    %1464 = vmatpush.msra.mxu0 0.0
    %1465 = vmatpush.msra.mxu0 0.0
    %1466 = vmatpush.msra.mxu0 0.0
    %1467 = vmatpush.msra.mxu0 0.0
    %1468 = vmatpush.msra.mxu0 0.0
    %1469 = vmatpush.msra.mxu0 %v1449
    %1470 = vmatmul.f32.gmra.mxu0 %v1452
    %v1471 = vpop.f32.mrf.mxu0
    %v1472 = vadd.f32 0.0, %v1471
    %1473 = vdwg.mxu0
    %v1475 = vsel %vm295, %v1446, 0
    %v1478 = vsel %vm295, %v1472, 0
    %1480 = vmatpush.msra.mxu0 0.0
    %1481 = vmatpush.msra.mxu0 0.0
    %1482 = vmatpush.msra.mxu0 0.0
    %1483 = vmatpush.msra.mxu0 0.0
    %1484 = vmatpush.msra.mxu0 0.0
    %1485 = vmatpush.msra.mxu0 0.0
    %1486 = vmatpush.msra.mxu0 0.0
    %1487 = vmatpush.msra.mxu0 0.0
    %1488 = vmatpush.msra.mxu0 0.0
    %1489 = vmatpush.msra.mxu0 0.0
    %1490 = vmatpush.msra.mxu0 0.0
    %1491 = vmatpush.msra.mxu0 0.0
    %1492 = vmatpush.msra.mxu0 0.0
    %1493 = vmatpush.msra.mxu0 0.0
    %1494 = vmatpush.msra.mxu0 0.0
    %1495 = vmatpush.msra.mxu0 %v1205
    %1496 = vmatmul.f32.gmra.mxu0 %v1475
    %v1497 = vpop.f32.mrf.mxu0
    %v1498 = vadd.f32 0.0, %v1497
    %1499 = vmatmul.f32.gmra.mxu0 %v1478
    %v1500 = vpop.f32.mrf.mxu0
    %v1501 = vadd.f32 0.0, %v1500
    %1502 = vdwg.mxu0
    %v1504 = vsel %vm295, %v1312, 0
    %v1507 = vsel %vm295, %v1338, 0
    %1509 = vmatpush.msra.mxu0 0.0
    %1510 = vmatpush.msra.mxu0 0.0
    %1511 = vmatpush.msra.mxu0 0.0
    %1512 = vmatpush.msra.mxu0 0.0
    %1513 = vmatpush.msra.mxu0 0.0
    %1514 = vmatpush.msra.mxu0 0.0
    %1515 = vmatpush.msra.mxu0 0.0
    %1516 = vmatpush.msra.mxu0 0.0
    %1517 = vmatpush.msra.mxu0 0.0
    %1518 = vmatpush.msra.mxu0 0.0
    %1519 = vmatpush.msra.mxu0 0.0
    %1520 = vmatpush.msra.mxu0 0.0
    %1521 = vmatpush.msra.mxu0 0.0
    %1522 = vmatpush.msra.mxu0 0.0
    %1523 = vmatpush.msra.mxu0 0.0
    %1524 = vmatpush.msra.mxu0 %v1204
    %1525 = vmatmul.f32.gmra.mxu0 %v1504
    %v1526 = vpop.f32.mrf.mxu0
    %v1527 = vadd.f32 %v1498, %v1526
    %1528 = vmatmul.f32.gmra.mxu0 %v1507
    %v1529 = vpop.f32.mrf.mxu0
    %v1530 = vadd.f32 %v1501, %v1529
    %1531 = vdwg.mxu0
    %1532 = vrot.lane.b32.xlu0 %v1199, 112
    %v1533 = vpop.permute.xlu0 %1532
    %1534 = vrot.lane.b32.xlu0 %v1199, 80
    %v1535 = vpop.permute.xlu0 %1534
    %v1536 = vsel %vm295, %v1533, 0
    %v1538 = vsel %vm295, %v1535, 0
    %1540 = vmatpush.xpose.msra.mxu0 0.0
    %1541 = vmatpush.xpose.msra.mxu0 0.0
    %1542 = vmatpush.xpose.msra.mxu0 0.0
    %1543 = vmatpush.xpose.msra.mxu0 0.0
    %1544 = vmatpush.xpose.msra.mxu0 0.0
    %1545 = vmatpush.xpose.msra.mxu0 0.0
    %1546 = vmatpush.xpose.msra.mxu0 0.0
    %1547 = vmatpush.xpose.msra.mxu0 0.0
    %1548 = vmatpush.xpose.msra.mxu0 0.0
    %1549 = vmatpush.xpose.msra.mxu0 0.0
    %1550 = vmatpush.xpose.msra.mxu0 0.0
    %1551 = vmatpush.xpose.msra.mxu0 0.0
    %1552 = vmatpush.xpose.msra.mxu0 0.0
    %1553 = vmatpush.xpose.msra.mxu0 0.0
    %1554 = vmatpush.xpose.msra.mxu0 0.0
    %1555 = vmatpush.xpose.msra.mxu0 %v1538
    %1556 = vmatmul.f32.gmra.mxu0 %v1536
    %v1557 = vpop.f32.mrf.mxu0
    %v1558 = vadd.f32 0.0, %v1557
    %1559 = vdwg.mxu0
    %1560 = vrot.lane.b32.xlu0 %v1202, 112
    %v1561 = vpop.permute.xlu0 %1560
    %1562 = vrot.lane.b32.xlu0 %v1202, 80
    %v1563 = vpop.permute.xlu0 %1562
    %v1564 = vsel %vm295, %v1561, 0
    %v1566 = vsel %vm295, %v1563, 0
    %1568 = vmatpush.xpose.msra.mxu0 0.0
    %1569 = vmatpush.xpose.msra.mxu0 0.0
    %1570 = vmatpush.xpose.msra.mxu0 0.0
    %1571 = vmatpush.xpose.msra.mxu0 0.0
    %1572 = vmatpush.xpose.msra.mxu0 0.0
    %1573 = vmatpush.xpose.msra.mxu0 0.0
    %1574 = vmatpush.xpose.msra.mxu0 0.0
    %1575 = vmatpush.xpose.msra.mxu0 0.0
    %1576 = vmatpush.xpose.msra.mxu0 0.0
    %1577 = vmatpush.xpose.msra.mxu0 0.0
    %1578 = vmatpush.xpose.msra.mxu0 0.0
    %1579 = vmatpush.xpose.msra.mxu0 0.0
    %1580 = vmatpush.xpose.msra.mxu0 0.0
    %1581 = vmatpush.xpose.msra.mxu0 0.0
    %1582 = vmatpush.xpose.msra.mxu0 0.0
    %1583 = vmatpush.xpose.msra.mxu0 %v1566
    %1584 = vmatmul.f32.gmra.mxu0 %v1564
    %v1585 = vpop.f32.mrf.mxu0
    %v1586 = vadd.f32 0.0, %v1585
    %1587 = vdwg.mxu0
    %v1588 = vmul.f32 %v1558, 0.35355338
    %v1589 = vmul.f32 %v1586, 0.35355338
    %v1590 = vadd.f32 %v1588, %v186
    %v1591 = vadd.f32 %v1589, %v186
    %v1592 = vsel %vm295, %v1590, -inf
    %1593 = vmax.xlane.f32.xlu0 %v1592
    %v1594 = vpop.xlane.xlu0 %1593
    %v1595 = vsel %vm295, %v1591, -inf
    %1596 = vmax.xlane.f32.xlu0 %v1595
    %v1597 = vpop.xlane.xlu0 %1596
    %v1598 = vsub.f32 %v1590, %v1594
    %v1599 = vsub.f32 %v1591, %v1597
    %v1600 = vmul.f32 %v1598, 1.442695
    %v1601 = vpow.pop %v1600
    %v1602 = vmul.f32 %v1599, 1.442695
    %v1603 = vpow.pop %v1602
    %v1604 = vsel %vm295, %v1601, 0.0
    %1605 = vadd.xlane.f32.xlu0 %v1604
    %v1606 = vpop.xlane.xlu0 %1605
    %v1607 = vsel %vm295, %v1603, 0.0
    %1608 = vadd.xlane.f32.xlu0 %v1607
    %v1609 = vpop.xlane.xlu0 %1608
    %v1610 = vrcp.pop %v1606
    %v1611 = vrcp.pop %v1609
    %v1612 = vmul.f32 %v1601, %v1610
    %v1613 = vmul.f32 %v1603, %v1611
    %1614 = vrot.lane.b32.xlu0 %v1199, 48
    %v1615 = vpop.permute.xlu0 %1614
    %v1618 = vsel %vm295, %v1612, 0
    %1620 = vmatpush.msra.mxu0 0.0
    %1621 = vmatpush.msra.mxu0 0.0
    %1622 = vmatpush.msra.mxu0 0.0
    %1623 = vmatpush.msra.mxu0 0.0
    %1624 = vmatpush.msra.mxu0 0.0
    %1625 = vmatpush.msra.mxu0 0.0
    %1626 = vmatpush.msra.mxu0 0.0
    %1627 = vmatpush.msra.mxu0 0.0
    %1628 = vmatpush.msra.mxu0 0.0
    %1629 = vmatpush.msra.mxu0 0.0
    %1630 = vmatpush.msra.mxu0 0.0
    %1631 = vmatpush.msra.mxu0 0.0
    %1632 = vmatpush.msra.mxu0 0.0
    %1633 = vmatpush.msra.mxu0 0.0
    %1634 = vmatpush.msra.mxu0 0.0
    %1635 = vmatpush.msra.mxu0 %v1615
    %1636 = vmatmul.f32.gmra.mxu0 %v1618
    %v1637 = vpop.f32.mrf.mxu0
    %v1638 = vadd.f32 0.0, %v1637
    %1639 = vdwg.mxu0
    %1640 = vrot.lane.b32.xlu0 %v1202, 48
    %v1641 = vpop.permute.xlu0 %1640
    %v1644 = vsel %vm295, %v1613, 0
    %1646 = vmatpush.msra.mxu0 0.0
    %1647 = vmatpush.msra.mxu0 0.0
    %1648 = vmatpush.msra.mxu0 0.0
    %1649 = vmatpush.msra.mxu0 0.0
    %1650 = vmatpush.msra.mxu0 0.0
    %1651 = vmatpush.msra.mxu0 0.0
    %1652 = vmatpush.msra.mxu0 0.0
    %1653 = vmatpush.msra.mxu0 0.0
    %1654 = vmatpush.msra.mxu0 0.0
    %1655 = vmatpush.msra.mxu0 0.0
    %1656 = vmatpush.msra.mxu0 0.0
    %1657 = vmatpush.msra.mxu0 0.0
    %1658 = vmatpush.msra.mxu0 0.0
    %1659 = vmatpush.msra.mxu0 0.0
    %1660 = vmatpush.msra.mxu0 0.0
    %1661 = vmatpush.msra.mxu0 %v1641
    %1662 = vmatmul.f32.gmra.mxu0 %v1644
    %v1663 = vpop.f32.mrf.mxu0
    %v1664 = vadd.f32 0.0, %v1663
    %1665 = vdwg.mxu0
    %v1667 = vsel %vm295, %v1638, 0
    %v1670 = vsel %vm295, %v1664, 0
    %1672 = vmatpush.msra.mxu0 0.0
    %1673 = vmatpush.msra.mxu0 0.0
    %1674 = vmatpush.msra.mxu0 0.0
    %1675 = vmatpush.msra.mxu0 0.0
    %1676 = vmatpush.msra.mxu0 0.0
    %1677 = vmatpush.msra.mxu0 0.0
    %1678 = vmatpush.msra.mxu0 0.0
    %1679 = vmatpush.msra.mxu0 0.0
    %1680 = vmatpush.msra.mxu0 0.0
    %1681 = vmatpush.msra.mxu0 0.0
    %1682 = vmatpush.msra.mxu0 0.0
    %1683 = vmatpush.msra.mxu0 0.0
    %1684 = vmatpush.msra.mxu0 0.0
    %1685 = vmatpush.msra.mxu0 0.0
    %1686 = vmatpush.msra.mxu0 0.0
    %1687 = vmatpush.msra.mxu0 %v1206
    %1688 = vmatmul.f32.gmra.mxu0 %v1667
    %v1689 = vpop.f32.mrf.mxu0
    %v1690 = vadd.f32 0.0, %v1689
    %1691 = vmatmul.f32.gmra.mxu0 %v1670
    %v1692 = vpop.f32.mrf.mxu0
    %v1693 = vadd.f32 0.0, %v1692
    %1694 = vdwg.mxu0
    %v1695 = vadd.f32 %v1527, %v1690
    %v1696 = vadd.f32 %v1530, %v1693
    %1697 = vrot.lane.b32.xlu0 %v1199, 104
    %v1698 = vpop.permute.xlu0 %1697
    %1699 = vrot.lane.b32.xlu0 %v1199, 72
    %v1700 = vpop.permute.xlu0 %1699
    %v1701 = vsel %vm295, %v1698, 0
    %v1703 = vsel %vm295, %v1700, 0
    %1705 = vmatpush.xpose.msra.mxu0 0.0
    %1706 = vmatpush.xpose.msra.mxu0 0.0
    %1707 = vmatpush.xpose.msra.mxu0 0.0
    %1708 = vmatpush.xpose.msra.mxu0 0.0
    %1709 = vmatpush.xpose.msra.mxu0 0.0
    %1710 = vmatpush.xpose.msra.mxu0 0.0
    %1711 = vmatpush.xpose.msra.mxu0 0.0
    %1712 = vmatpush.xpose.msra.mxu0 0.0
    %1713 = vmatpush.xpose.msra.mxu0 0.0
    %1714 = vmatpush.xpose.msra.mxu0 0.0
    %1715 = vmatpush.xpose.msra.mxu0 0.0
    %1716 = vmatpush.xpose.msra.mxu0 0.0
    %1717 = vmatpush.xpose.msra.mxu0 0.0
    %1718 = vmatpush.xpose.msra.mxu0 0.0
    %1719 = vmatpush.xpose.msra.mxu0 0.0
    %1720 = vmatpush.xpose.msra.mxu0 %v1703
    %1721 = vmatmul.f32.gmra.mxu0 %v1701
    %v1722 = vpop.f32.mrf.mxu0
    %v1723 = vadd.f32 0.0, %v1722
    %1724 = vdwg.mxu0
    %1725 = vrot.lane.b32.xlu0 %v1202, 104
    %v1726 = vpop.permute.xlu0 %1725
    %1727 = vrot.lane.b32.xlu0 %v1202, 72
    %v1728 = vpop.permute.xlu0 %1727
    %v1729 = vsel %vm295, %v1726, 0
    %v1731 = vsel %vm295, %v1728, 0
    %1733 = vmatpush.xpose.msra.mxu0 0.0
    %1734 = vmatpush.xpose.msra.mxu0 0.0
    %1735 = vmatpush.xpose.msra.mxu0 0.0
    %1736 = vmatpush.xpose.msra.mxu0 0.0
    %1737 = vmatpush.xpose.msra.mxu0 0.0
    %1738 = vmatpush.xpose.msra.mxu0 0.0
    %1739 = vmatpush.xpose.msra.mxu0 0.0
    %1740 = vmatpush.xpose.msra.mxu0 0.0
    %1741 = vmatpush.xpose.msra.mxu0 0.0
    %1742 = vmatpush.xpose.msra.mxu0 0.0
    %1743 = vmatpush.xpose.msra.mxu0 0.0
    %1744 = vmatpush.xpose.msra.mxu0 0.0
    %1745 = vmatpush.xpose.msra.mxu0 0.0
    %1746 = vmatpush.xpose.msra.mxu0 0.0
    %1747 = vmatpush.xpose.msra.mxu0 0.0
    %1748 = vmatpush.xpose.msra.mxu0 %v1731
    %1749 = vmatmul.f32.gmra.mxu0 %v1729
    %v1750 = vpop.f32.mrf.mxu0
    %v1751 = vadd.f32 0.0, %v1750
    %1752 = vdwg.mxu0
    %v1753 = vmul.f32 %v1723, 0.35355338
    %v1754 = vmul.f32 %v1751, 0.35355338
    %v1755 = vadd.f32 %v1753, %v186
    %v1756 = vadd.f32 %v1754, %v186
    %v1757 = vsel %vm295, %v1755, -inf
    %1758 = vmax.xlane.f32.xlu0 %v1757
    %v1759 = vpop.xlane.xlu0 %1758
    %v1760 = vsel %vm295, %v1756, -inf
    %1761 = vmax.xlane.f32.xlu0 %v1760
    %v1762 = vpop.xlane.xlu0 %1761
    %v1763 = vsub.f32 %v1755, %v1759
    %v1764 = vsub.f32 %v1756, %v1762
    %v1765 = vmul.f32 %v1763, 1.442695
    %v1766 = vpow.pop %v1765
    %v1767 = vmul.f32 %v1764, 1.442695
    %v1768 = vpow.pop %v1767
    %v1769 = vsel %vm295, %v1766, 0.0
    %1770 = vadd.xlane.f32.xlu0 %v1769
    %v1771 = vpop.xlane.xlu0 %1770
    %v1772 = vsel %vm295, %v1768, 0.0
    %1773 = vadd.xlane.f32.xlu0 %v1772
    %v1774 = vpop.xlane.xlu0 %1773
    %v1775 = vrcp.pop %v1771
    %v1776 = vrcp.pop %v1774
    %v1777 = vmul.f32 %v1766, %v1775
    %v1778 = vmul.f32 %v1768, %v1776
    %1779 = vrot.lane.b32.xlu0 %v1199, 40
    %v1780 = vpop.permute.xlu0 %1779
    %v1783 = vsel %vm295, %v1777, 0
    %1785 = vmatpush.msra.mxu0 0.0
    %1786 = vmatpush.msra.mxu0 0.0
    %1787 = vmatpush.msra.mxu0 0.0
    %1788 = vmatpush.msra.mxu0 0.0
    %1789 = vmatpush.msra.mxu0 0.0
    %1790 = vmatpush.msra.mxu0 0.0
    %1791 = vmatpush.msra.mxu0 0.0
    %1792 = vmatpush.msra.mxu0 0.0
    %1793 = vmatpush.msra.mxu0 0.0
    %1794 = vmatpush.msra.mxu0 0.0
    %1795 = vmatpush.msra.mxu0 0.0
    %1796 = vmatpush.msra.mxu0 0.0
    %1797 = vmatpush.msra.mxu0 0.0
    %1798 = vmatpush.msra.mxu0 0.0
    %1799 = vmatpush.msra.mxu0 0.0
    %1800 = vmatpush.msra.mxu0 %v1780
    %1801 = vmatmul.f32.gmra.mxu0 %v1783
    %v1802 = vpop.f32.mrf.mxu0
    %v1803 = vadd.f32 0.0, %v1802
    %1804 = vdwg.mxu0
    %1805 = vrot.lane.b32.xlu0 %v1202, 40
    %v1806 = vpop.permute.xlu0 %1805
    %v1809 = vsel %vm295, %v1778, 0
    %1811 = vmatpush.msra.mxu0 0.0
    %1812 = vmatpush.msra.mxu0 0.0
    %1813 = vmatpush.msra.mxu0 0.0
    %1814 = vmatpush.msra.mxu0 0.0
    %1815 = vmatpush.msra.mxu0 0.0
    %1816 = vmatpush.msra.mxu0 0.0
    %1817 = vmatpush.msra.mxu0 0.0
    %1818 = vmatpush.msra.mxu0 0.0
    %1819 = vmatpush.msra.mxu0 0.0
    %1820 = vmatpush.msra.mxu0 0.0
    %1821 = vmatpush.msra.mxu0 0.0
    %1822 = vmatpush.msra.mxu0 0.0
    %1823 = vmatpush.msra.mxu0 0.0
    %1824 = vmatpush.msra.mxu0 0.0
    %1825 = vmatpush.msra.mxu0 0.0
    %1826 = vmatpush.msra.mxu0 %v1806
    %1827 = vmatmul.f32.gmra.mxu0 %v1809
    %v1828 = vpop.f32.mrf.mxu0
    %v1829 = vadd.f32 0.0, %v1828
    %1830 = vdwg.mxu0
    %v1832 = vsel %vm295, %v1803, 0
    %v1835 = vsel %vm295, %v1829, 0
    %1837 = vmatpush.msra.mxu0 0.0
    %1838 = vmatpush.msra.mxu0 0.0
    %1839 = vmatpush.msra.mxu0 0.0
    %1840 = vmatpush.msra.mxu0 0.0
    %1841 = vmatpush.msra.mxu0 0.0
    %1842 = vmatpush.msra.mxu0 0.0
    %1843 = vmatpush.msra.mxu0 0.0
    %1844 = vmatpush.msra.mxu0 0.0
    %1845 = vmatpush.msra.mxu0 0.0
    %1846 = vmatpush.msra.mxu0 0.0
    %1847 = vmatpush.msra.mxu0 0.0
    %1848 = vmatpush.msra.mxu0 0.0
    %1849 = vmatpush.msra.mxu0 0.0
    %1850 = vmatpush.msra.mxu0 0.0
    %1851 = vmatpush.msra.mxu0 0.0
    %1852 = vmatpush.msra.mxu0 %v1207
    %1853 = vmatmul.f32.gmra.mxu0 %v1832
    %v1854 = vpop.f32.mrf.mxu0
    %v1855 = vadd.f32 0.0, %v1854
    %1856 = vmatmul.f32.gmra.mxu0 %v1835
    %v1857 = vpop.f32.mrf.mxu0
    %v1858 = vadd.f32 0.0, %v1857
    %1859 = vdwg.mxu0
    %v1860 = vadd.f32 %v1695, %v1855
    %v1861 = vadd.f32 %v1696, %v1858
    %v1862 = vadd.f32 %v1109, %v1860
    %v1863 = vadd.f32 %v1110, %v1861
    %v1864 = vld [vmem:[%s41] sm:$0x1]
    %v1866 = vperm.slane %v1864, 0
    %v1868 = vadd.f32 %v1862, %v1866
    %v1869 = vadd.f32 %v1863, %v1866
    %v1870 = vld [vmem:[%s43] sm:$0x1]
    %v1871 = vld [vmem:[%s45] sm:$0x1]
    %v1872 = vsel %vm189, %v1868, 0.0
    %1873 = vadd.xlane.f32.xlu0 %v1872
    %v1874 = vpop.xlane.xlu0 %1873
    %v1875 = vsel %vm189, %v1869, 0.0
    %1876 = vadd.xlane.f32.xlu0 %v1875
    %v1877 = vpop.xlane.xlu0 %1876
    %v1878 = vmul.f32 %v1874, %v202
    %v1879 = vmul.f32 %v1877, %v202
    %v1880 = vsub.f32 %v1868, %v1878
    %v1881 = vsub.f32 %v1869, %v1879
    %v1882 = vmul.f32 %v1880, %v1880
    %v1883 = vmul.f32 %v1881, %v1881
    %v1884 = vsel %vm189, %v1882, 0.0
    %1885 = vadd.xlane.f32.xlu0 %v1884
    %v1886 = vpop.xlane.xlu0 %1885
    %v1887 = vsel %vm189, %v1883, 0.0
    %1888 = vadd.xlane.f32.xlu0 %v1887
    %v1889 = vpop.xlane.xlu0 %1888
    %v1890 = vmul.f32 %v1886, %v202
    %v1891 = vmul.f32 %v1889, %v202
    %v1892 = vadd.f32 %v1890, 1e-05
    %v1893 = vadd.f32 %v1891, 1e-05
    %v1894 = vrsqrt.pop %v1892
    %v1895 = vmul.f32 %v1894, %v1892
    %v1896 = vmul.f32 %v1895, %v1894
    %v1897 = vmul.f32 0.5, %v1896
    %v1898 = vsub.f32 1.5, %v1897
    %v1899 = vmul.f32 %v1894, %v1898
    %vm1900 = vweird.f32 %v1892
    %vm1901 = vweird.f32 %v1894
    %vm1902 = vmor %vm1900, %vm1901
    %v1903 = vsel %vm1902, %v1894, %v1899
    %v1904 = vrsqrt.pop %v1893
    %v1905 = vmul.f32 %v1904, %v1893
    %v1906 = vmul.f32 %v1905, %v1904
    %v1907 = vmul.f32 0.5, %v1906
    %v1908 = vsub.f32 1.5, %v1907
    %v1909 = vmul.f32 %v1904, %v1908
    %vm1910 = vweird.f32 %v1893
    %vm1911 = vweird.f32 %v1904
    %vm1912 = vmor %vm1910, %vm1911
    %v1913 = vsel %vm1912, %v1904, %v1909
    %v1914 = vmul.f32 %v1880, %v1903
    %v1915 = vmul.f32 %v1881, %v1913
    %v1917 = vperm.slane %v1870, 0
    %v1919 = vmul.f32 %v1914, %v1917
    %v1920 = vmul.f32 %v1915, %v1917
    %v1922 = vperm.slane %v1871, 0
    %v1924 = vadd.f32 %v1919, %v1922
    %v1925 = vadd.f32 %v1920, %v1922
    %v1926 = vld [vmem:[%s47] sm:$0xff]
    %v1927 = vld [vmem:[%s47 + $0x8] sm:$0xff]
    %v1928 = vld [vmem:[%s47 + $0x10] sm:$0xff]
    %v1929 = vld [vmem:[%s47 + $0x18] sm:$0xff]
    %v1930 = vld [vmem:[%s49] sm:$0x1]
    %v1932 = vperm.slane %v1930, 0
    %v1935 = vsel %vm189, %v1924, 0
    %v1938 = vsel %vm189, %v1925, 0
    %1940 = vmatpush.msra.mxu0 0.0
    %1941 = vmatpush.msra.mxu0 0.0
    %1942 = vmatpush.msra.mxu0 0.0
    %1943 = vmatpush.msra.mxu0 0.0
    %1944 = vmatpush.msra.mxu0 0.0
    %1945 = vmatpush.msra.mxu0 0.0
    %1946 = vmatpush.msra.mxu0 0.0
    %1947 = vmatpush.msra.mxu0 0.0
    %1948 = vmatpush.msra.mxu0 0.0
    %1949 = vmatpush.msra.mxu0 0.0
    %1950 = vmatpush.msra.mxu0 0.0
    %1951 = vmatpush.msra.mxu0 0.0
    %1952 = vmatpush.msra.mxu0 %v1929
    %1953 = vmatpush.msra.mxu0 %v1928
    %1954 = vmatpush.msra.mxu0 %v1927
    %1955 = vmatpush.msra.mxu0 %v1926
    %1956 = vmatmul.f32.gmra.mxu0 %v1935
    %v1957 = vpop.f32.mrf.mxu0
    %v1958 = vadd.f32 %v1932, %v1957
    %1959 = vmatmul.f32.gmra.mxu0 %v1938
    %v1960 = vpop.f32.mrf.mxu0
    %v1961 = vadd.f32 %v1932, %v1960
    %1962 = vdwg.mxu0
    %v1963 = vmul.f32 %v1958, 0.5
    %v1964 = vmul.f32 %v1961, 0.5
    %v1965 = vmul.f32 %v1958, 0.044715
    %v1966 = vmul.f32 %v1961, 0.044715
    %v1967 = vmul.f32 %v1965, %v1958
    %v1968 = vmul.f32 %v1966, %v1961
    %v1969 = vmul.f32 %v1967, %v1958
    %v1970 = vmul.f32 %v1968, %v1961
    %v1971 = vadd.f32 %v1958, %v1969
    %v1972 = vadd.f32 %v1961, %v1970
    %v1973 = vmul.f32 %v1971, 0.7978846
    %v1974 = vmul.f32 %v1972, 0.7978846
    %v1975 = vtanh.pop %v1973
    %v1976 = vtanh.pop %v1974
    %v1977 = vadd.f32 %v1975, 1.0
    %v1978 = vadd.f32 %v1976, 1.0
    %v1979 = vmul.f32 %v1963, %v1977
    %v1980 = vmul.f32 %v1964, %v1978
    %v1981 = vld [vmem:[%s51] sm:$0xff]
    %v1982 = vld [vmem:[%s51 + $0x8] sm:$0xff]
    %v1983 = vld [vmem:[%s51 + $0x10] sm:$0xff]
    %v1984 = vld [vmem:[%s51 + $0x18] sm:$0xff]
    %v1985 = vld [vmem:[%s51 + $0x20] sm:$0xff]
    %v1986 = vld [vmem:[%s51 + $0x28] sm:$0xff]
    %v1987 = vld [vmem:[%s51 + $0x30] sm:$0xff]
    %v1988 = vld [vmem:[%s51 + $0x38] sm:$0xff]
    %v1989 = vld [vmem:[%s51 + $0x40] sm:$0xff]
    %v1990 = vld [vmem:[%s51 + $0x48] sm:$0xff]
    %v1991 = vld [vmem:[%s51 + $0x50] sm:$0xff]
    %v1992 = vld [vmem:[%s51 + $0x58] sm:$0xff]
    %v1993 = vld [vmem:[%s51 + $0x60] sm:$0xff]
    %v1994 = vld [vmem:[%s51 + $0x68] sm:$0xff]
    %v1995 = vld [vmem:[%s51 + $0x70] sm:$0xff]
    %v1996 = vld [vmem:[%s51 + $0x78] sm:$0xff]
    %v1997 = vld [vmem:[%s53] sm:$0x1]
    %v1999 = vperm.slane %v1997, 0
    %2001 = vmatpush.msra.mxu0 %v1996
    %2002 = vmatpush.msra.mxu0 %v1995
    %2003 = vmatpush.msra.mxu0 %v1994
    %2004 = vmatpush.msra.mxu0 %v1993
    %2005 = vmatpush.msra.mxu0 %v1992
    %2006 = vmatpush.msra.mxu0 %v1991
    %2007 = vmatpush.msra.mxu0 %v1990
    %2008 = vmatpush.msra.mxu0 %v1989
    %2009 = vmatpush.msra.mxu0 %v1988
    %2010 = vmatpush.msra.mxu0 %v1987
    %2011 = vmatpush.msra.mxu0 %v1986
    %2012 = vmatpush.msra.mxu0 %v1985
    %2013 = vmatpush.msra.mxu0 %v1984
    %2014 = vmatpush.msra.mxu0 %v1983
    %2015 = vmatpush.msra.mxu0 %v1982
    %2016 = vmatpush.msra.mxu0 %v1981
    %2017 = vmatmul.f32.gmra.mxu0 %v1979
    %v2018 = vpop.f32.mrf.mxu0
    %v2019 = vadd.f32 %v1999, %v2018
    %2020 = vmatmul.f32.gmra.mxu0 %v1980
    %v2021 = vpop.f32.mrf.mxu0
    %v2022 = vadd.f32 %v1999, %v2021
    %2023 = vdwg.mxu0
    %v2024 = vadd.f32 %v1868, %v2019
    %v2025 = vadd.f32 %v1869, %v2022
    %v2026 = vld [vmem:[%s55] sm:$0x1]
    %v2027 = vld [vmem:[%s57] sm:$0x1]
    %v2028 = vsel %vm189, %v2024, 0.0
    %2029 = vadd.xlane.f32.xlu0 %v2028
    %v2030 = vpop.xlane.xlu0 %2029
    %v2031 = vsel %vm189, %v2025, 0.0
    %2032 = vadd.xlane.f32.xlu0 %v2031
    %v2033 = vpop.xlane.xlu0 %2032
    %v2034 = vmul.f32 %v2030, %v202
    %v2035 = vmul.f32 %v2033, %v202
    %v2036 = vsub.f32 %v2024, %v2034
    %v2037 = vsub.f32 %v2025, %v2035
    %v2038 = vmul.f32 %v2036, %v2036
    %v2039 = vmul.f32 %v2037, %v2037
    %v2040 = vsel %vm189, %v2038, 0.0
    %2041 = vadd.xlane.f32.xlu0 %v2040
    %v2042 = vpop.xlane.xlu0 %2041
    %v2043 = vsel %vm189, %v2039, 0.0
    %2044 = vadd.xlane.f32.xlu0 %v2043
    %v2045 = vpop.xlane.xlu0 %2044
    %v2046 = vmul.f32 %v2042, %v202
    %v2047 = vmul.f32 %v2045, %v202
    %v2048 = vadd.f32 %v2046, 1e-05
    %v2049 = vadd.f32 %v2047, 1e-05
    %v2050 = vrsqrt.pop %v2048
    %v2051 = vmul.f32 %v2050, %v2048
    %v2052 = vmul.f32 %v2051, %v2050
    %v2053 = vmul.f32 0.5, %v2052
    %v2054 = vsub.f32 1.5, %v2053
    %v2055 = vmul.f32 %v2050, %v2054
    %vm2056 = vweird.f32 %v2048
    %vm2057 = vweird.f32 %v2050
    %vm2058 = vmor %vm2056, %vm2057
    %v2059 = vsel %vm2058, %v2050, %v2055
    %v2060 = vrsqrt.pop %v2049
    %v2061 = vmul.f32 %v2060, %v2049
    %v2062 = vmul.f32 %v2061, %v2060
    %v2063 = vmul.f32 0.5, %v2062
    %v2064 = vsub.f32 1.5, %v2063
    %v2065 = vmul.f32 %v2060, %v2064
    %vm2066 = vweird.f32 %v2049
    %vm2067 = vweird.f32 %v2060
    %vm2068 = vmor %vm2066, %vm2067
    %v2069 = vsel %vm2068, %v2060, %v2065
    %v2070 = vmul.f32 %v2036, %v2059
    %v2071 = vmul.f32 %v2037, %v2069
    %v2073 = vperm.slane %v2026, 0
    %v2075 = vmul.f32 %v2070, %v2073
    %v2076 = vmul.f32 %v2071, %v2073
    %v2078 = vperm.slane %v2027, 0
    %v2080 = vadd.f32 %v2075, %v2078
    %v2081 = vadd.f32 %v2076, %v2078
    %v2082 = vld [vmem:[%s59] sm:$0xff]
    %v2083 = vld [vmem:[%s59 + $0x8] sm:$0xff]
    %v2084 = vld [vmem:[%s59 + $0x10] sm:$0xff]
    %v2085 = vld [vmem:[%s59 + $0x18] sm:$0xff]
    %v2087 = vsel %vm189, %v2080, 0
    %v2090 = vsel %vm189, %v2081, 0
    %2092 = vmatpush.msra.mxu0 0.0
    %2093 = vmatpush.msra.mxu0 0.0
    %2094 = vmatpush.msra.mxu0 0.0
    %2095 = vmatpush.msra.mxu0 0.0
    %2096 = vmatpush.msra.mxu0 0.0
    %2097 = vmatpush.msra.mxu0 0.0
    %2098 = vmatpush.msra.mxu0 0.0
    %2099 = vmatpush.msra.mxu0 0.0
    %2100 = vmatpush.msra.mxu0 0.0
    %2101 = vmatpush.msra.mxu0 0.0
    %2102 = vmatpush.msra.mxu0 0.0
    %2103 = vmatpush.msra.mxu0 0.0
    %2104 = vmatpush.msra.mxu0 %v2085
    %2105 = vmatpush.msra.mxu0 %v2084
    %2106 = vmatpush.msra.mxu0 %v2083
    %2107 = vmatpush.msra.mxu0 %v2082
    %2108 = vmatmul.f32.gmra.mxu0 %v2087
    %v2109 = vpop.f32.mrf.mxu0
    %v2110 = vadd.f32 0.0, %v2109
    %2111 = vmatmul.f32.gmra.mxu0 %v2090
    %v2112 = vpop.f32.mrf.mxu0
    %v2113 = vadd.f32 0.0, %v2112
    %2114 = vdwg.mxu0
    %2115 = vst [vmem:[#allocation2] sm:$0xff] %v2110
    %2116 = vst [vmem:[#allocation2 + $0x8] sm:$0xff] %v2113
    // Predicated region
    $region122: #{tpu_custom_call.1} parent=1 // pred_check
      _
    $region123: #{tpu_custom_call.1} parent=1 // pred_check_branch
      %2118 = sbr.rel (0) target = $region125
    $region124: #{tpu_custom_call.1} parent=1 // pred_region
      %2120 = vsyncadd [#allocation3], 0
      %s2121 = sshll.u32 [#allocation2], 4
      %s2122 = int_to_ptr.vmem [resolvable:$true] %s2121
      %s2123 = sshll.u32 %s61, 4
      %s2124 = int_to_ptr.hbm [resolvable:$true] %s2123
      %2129 = dma.vmem_to_hbm [thread:$0]  %s2122, 256, %s2124, [#allocation3], 128, 128, 8
    $region125: #{tpu_custom_call.1} parent=1 // pred_fallthru
      _
    // Predicated region
    $region126: #{tpu_custom_call.1} parent=1 // pred_check
      _
    $region127: #{tpu_custom_call.1} parent=1 // pred_check_branch
      %2131 = sbr.rel (0) target = $region129
    $region128: #{tpu_custom_call.1} parent=1 // pred_region
      %2133 = dma.done [#allocation3], 256
    $region129: #{tpu_custom_call.1} parent=1 // pred_fallthru
      _
    %2134 = vsyncpa [#allocation3], 1

</llo_original>
